<compile_context>
chip_gen: v7x
topology: tpu7x:2x2x1
jax: 0.10.0
libtpu: 0.0.40
codegen_flags: <defaults>
</compile_context>

<pallas_src>
import jax
import jax.numpy as jnp
from jax.experimental import pallas as pl
from jax.experimental.pallas import tpu as pltpu

NUM_CONVS = 13  # 9 BasicBlock_1 ends + 3 BasicBlock_2 ends + 1 BasicBlock_3 end

# x2 (the in-place aliased residual) folded into the 9 BasicBlock_1 end convs.
_W_SCALE = (2.0, 2.0, 2.0, 1.0,
            2.0, 2.0, 2.0, 1.0,
            2.0, 2.0, 2.0, 1.0,
            1.0)

_LANE_TILE_CAP = 2048  # review: raise lane-tile cap well beyond 512


def _round_up(n: int, m: int) -> int:
    return ((n + m - 1) // m) * m


def _block3_kernel(x_ref, w_ref, b_ref, o_ref):
    """x_ref/o_ref: (C, T) tiles (channels on sublanes, columns on lanes).
    w_ref: (13, C, C) PyTorch (C_out, C_in) orientation, nine B1 weights
    pre-scaled by 2.  b_ref: (13, C, 1) f32."""
    C = x_ref.shape[0]
    T = x_ref.shape[-1]
    cdt = w_ref.dtype                       # MXU input dtype (bf16 or f32)
    use_vpu = C <= 8                        # tiny C: MXU matmul is ~all padding

    def conv(v32, k):
        # 1x1 Conv1d == (C, C) @ (C, T) channel matmul, f32 accumulation.
        if use_vpu:
            # VPU broadcast-FMA: out[o,:] = sum_i w[o,i] * v[i,:]  (no MXU
            # round trip, no casts; C*C full-tile FMAs).
            w32 = w_ref[k].astype(jnp.float32)                  # (C, C)
            acc = w32[:, 0:1] * v32[0:1, :]
            for i in range(1, C):
                acc = acc + w32[:, i:i + 1] * v32[i:i + 1, :]
            return acc + b_ref[k]
        return (
            jnp.dot(w_ref[k], v32.astype(cdt), preferred_element_type=jnp.float32)
            + b_ref[k]
        )

    def b1(v32, k):
        # BasicBlock_1: end conv sees 2*v; the x2 is folded into w_ref[k].
        return jnp.maximum(conv(v32, k), 0.0)

    def b2(v32, two_v32, k0):
        a = b1(v32, k0)
        a = b1(a, k0 + 1)
        a = b1(a, k0 + 2)
        # First inner B1 doubled the aliased identity in place -> residual 2*v.
        return jnp.maximum(conv(a + two_v32, k0 + 3), 0.0)

    def chain(x32):
        two_x = x32 + x32                   # hoisted: reused by b2(.,0) and end
        z = b2(x32, two_x, 0)
        z = b2(z, z + z, 4)
        z = b2(z, z + z, 8)
        return jnp.maximum(conv(z + two_x, 12), 0.0)

    if (not use_vpu) and T % 256 == 0:
        # Two independent half-tile chains so one chain's matmuls fill the
        # other's MXU push/drain bubbles (13-deep dependent chain; v5e/v6e MRF).
        h = T // 2
        o_ref[:, :h] = chain(x_ref[:, :h].astype(jnp.float32)).astype(o_ref.dtype)
        o_ref[:, h:] = chain(x_ref[:, h:].astype(jnp.float32)).astype(o_ref.dtype)
    else:
        o_ref[...] = chain(x_ref[...].astype(jnp.float32)).astype(o_ref.dtype)


def _fold_params(weights, biases, cdt):
    scale = jnp.asarray(_W_SCALE, dtype=jnp.float32)[:, None, None]
    w = (weights.astype(jnp.float32) * scale).astype(cdt)
    b = biases.reshape(NUM_CONVS, -1, 1).astype(jnp.float32)
    return w, b


def _vmem_limit(C, tile_cols, act_itemsize, w_itemsize):
    est = (
        4 * C * tile_cols * act_itemsize      # double-buffered in + out tiles
        + 2 * NUM_CONVS * C * C * w_itemsize  # weight block (constant index map)
        + 2 * NUM_CONVS * 8 * 128 * 4         # bias block, padded to (8,128) tiles
        + 8 * C * tile_cols * 4               # live f32 intermediates / spill
    )
    return int(max(32 * 1024 * 1024, min(64 * 1024 * 1024, 2 * est)))


@jax.jit
def basic_block_3(x_ncl, weights, biases):
    """x_ncl: (N, C, L); weights: (13, C, C) PyTorch-style (C_out, C_in);
    biases: (13, C).  Returns (N, C, L)."""
    N, C, L = x_ncl.shape
    out_dtype = x_ncl.dtype
    cdt = x_ncl.dtype                        # MXU input dtype follows activations
    w, b = _fold_params(weights, biases, cdt)
    act_item = jnp.dtype(out_dtype).itemsize
    w_item = jnp.dtype(cdt).itemsize

    whole_l_fits = C * L * act_item * 10 <= 4 * 1024 * 1024

    if L % 128 == 0 or whole_l_fits:
        # -------- Direct (N, C, L) path: no layout passes around the kernel.
        if L % 128 == 0:
            TL = min(_LANE_TILE_CAP, L)
            # Keep >= 2 grid steps so v7x's two TensorCores both get work.
            if N * pl.cdiv(L, TL) < 2 and L >= 256:
                TL = _round_up(L // 2, 128)
        else:
            TL = L                            # small ragged L: full length / block
        grid = (N, pl.cdiv(L, TL))

        return pl.pallas_call(
            _block3_kernel,
            out_shape=jax.ShapeDtypeStruct((N, C, L), out_dtype),
            grid_spec=pltpu.PrefetchScalarGridSpec(
                num_scalar_prefetch=0,
                grid=grid,
                in_specs=[
                    pl.BlockSpec((None, C, TL), lambda n, l: (n, 0, l)),
                    pl.BlockSpec((NUM_CONVS, C, C), lambda n, l: (0, 0, 0)),
                    pl.BlockSpec((NUM_CONVS, C, 1), lambda n, l: (0, 0, 0)),
                ],
                out_specs=pl.BlockSpec((None, C, TL), lambda n, l: (n, 0, l)),
            ),
            compiler_params=pltpu.CompilerParams(
                dimension_semantics=("parallel", "parallel"),
                vmem_limit_bytes=_vmem_limit(C, TL, act_item, w_item),
            ),
        )(x_ncl, w, b)

    # -------- Fallback for large ragged L: flatten to (C, N*L), rows on lanes.
    rows = N * L
    x_cr = jnp.transpose(x_ncl, (1, 0, 2)).reshape(C, rows)
    rows_pad = _round_up(rows, 128)           # pad to 128, not to the tile
    if rows_pad != rows:
        x_cr = jnp.pad(x_cr, ((0, 0), (0, rows_pad - rows)))
    tm = min(_LANE_TILE_CAP, rows_pad)
    if pl.cdiv(rows_pad, tm) < 2 and rows_pad >= 256:
        tm = _round_up(rows_pad // 2, 128)    # keep >= 2 steps for v7x
    grid = (pl.cdiv(rows_pad, tm),)

    out_cr = pl.pallas_call(
        _block3_kernel,
        out_shape=jax.ShapeDtypeStruct((C, rows_pad), out_dtype),
        grid_spec=pltpu.PrefetchScalarGridSpec(
            num_scalar_prefetch=0,
            grid=grid,
            in_specs=[
                pl.BlockSpec((C, tm), lambda i: (0, i)),
                pl.BlockSpec((NUM_CONVS, C, C), lambda i: (0, 0, 0)),
                pl.BlockSpec((NUM_CONVS, C, 1), lambda i: (0, 0, 0)),
            ],
            out_specs=pl.BlockSpec((C, tm), lambda i: (0, i)),
        ),
        compiler_params=pltpu.CompilerParams(
            dimension_semantics=("parallel",),
            vmem_limit_bytes=_vmem_limit(C, tm, act_item, w_item),
        ),
    )(x_cr, w, b)

    out_cr = out_cr[:, :rows]                 # drop row padding (per-column op)
    return out_cr.reshape(C, N, L).transpose(1, 0, 2)


def _reference(x, weights, biases):
    """Pure-JAX reference of the derived BasicBlock_3 semantics, NCL layout."""
    def conv(v, k):
        return jnp.einsum("oi,nil->nol", weights[k], v) + biases[k][None, :, None]

    def b1(v, k):
        return jax.nn.relu(conv(2.0 * v, k))

    def b2(v, k0):
        a = b1(v, k0)
        a = b1(a, k0 + 1)
        a = b1(a, k0 + 2)
        return jax.nn.relu(conv(a + 2.0 * v, k0 + 3))

    z = b2(x, 0)
    z = b2(z, 4)
    z = b2(z, 8)
    return jax.nn.relu(conv(z + 2.0 * x, 12))


if __name__ == "__main__":
    # Small shapes consistent with the module: Conv1d input (N, C, L).
    N, C, L = 2, 4, 16
    key = jax.random.PRNGKey(0)
    kx, kw, kb = jax.random.split(key, 3)

    x = jax.random.normal(kx, (N, C, L), dtype=jnp.float32)
    # Deterministic synthetic parameters for the 13 live 1x1 convs.
    weights = jax.random.uniform(
        kw, (NUM_CONVS, C, C), dtype=jnp.float32, minval=-0.5, maxval=0.5
    ) / jnp.sqrt(float(C))
    biases = jax.random.uniform(
        kb, (NUM_CONVS, C), dtype=jnp.float32, minval=-0.1, maxval=0.1
    )

    out = jax.block_until_ready(basic_block_3(x, weights, biases))

    ref = _reference(x, weights, biases)
    assert out.shape == (N, C, L), out.shape
    err = float(jnp.max(jnp.abs(out - ref)))
    assert jnp.allclose(out, ref, atol=1e-5, rtol=1e-5), err
    print("KERNEL_OK")
</pallas_src>

<mosaic_0001>
module attributes {stable_mosaic.version = 11 : i64} {
  func.func @_block3_kernel(%arg0: i32, %arg1: i32, %arg2: memref<1x4x16xf32, #tpu.memory_space<vmem>>, %arg3: memref<13x4x4xf32, #tpu.memory_space<vmem>>, %arg4: memref<13x4x1xf32, #tpu.memory_space<vmem>>, %arg5: memref<1x4x16xf32, #tpu.memory_space<vmem>>) attributes {dimension_semantics = [#tpu.dimension_semantics<parallel>, #tpu.dimension_semantics<parallel>], iteration_bounds = array<i64: 2, 1>, scalar_prefetch = 0 : i64, scratch_operands = 0 : i64, tpu.core_type = #tpu.core_type<tc>, window_params = [{transform_indices = @transform_0, window_bounds = array<i64: 1, 4, 16>}, {pipeline_mode = #tpu.pipeline_mode<synchronous>, transform_indices = @transform_1, window_bounds = array<i64: 13, 4, 4>}, {pipeline_mode = #tpu.pipeline_mode<synchronous>, transform_indices = @transform_2, window_bounds = array<i64: 13, 4, 1>}, {transform_indices = @transform_3, window_bounds = array<i64: 1, 4, 16>}]} {
    %c0 = arith.constant 0 : index
    %c0_0 = arith.constant 0 : index
    %c0_1 = arith.constant 0 : index
    %0 = vector.load %arg2[%c0, %c0_0, %c0_1] : memref<1x4x16xf32, #tpu.memory_space<vmem>>, vector<1x4x16xf32>
    %1 = vector.shape_cast %0 : vector<1x4x16xf32> to vector<4x16xf32>
    %2 = arith.addf %1, %1 : vector<4x16xf32>
    %c0_2 = arith.constant 0 : index
    %c0_3 = arith.constant 0 : index
    %c0_4 = arith.constant 0 : index
    %3 = vector.load %arg3[%c0_2, %c0_3, %c0_4] : memref<13x4x4xf32, #tpu.memory_space<vmem>>, vector<1x4x4xf32>
    %4 = vector.shape_cast %3 : vector<1x4x4xf32> to vector<4x4xf32>
    %5 = vector.extract_strided_slice %4 {offsets = [0, 0], sizes = [4, 1], strides = [1, 1]} : vector<4x4xf32> to vector<4x1xf32>
    %6 = vector.extract_strided_slice %1 {offsets = [0, 0], sizes = [1, 16], strides = [1, 1]} : vector<4x16xf32> to vector<1x16xf32>
    %7 = vector.broadcast %5 : vector<4x1xf32> to vector<4x16xf32>
    %8 = vector.broadcast %6 : vector<1x16xf32> to vector<4x16xf32>
    %9 = arith.mulf %7, %8 : vector<4x16xf32>
    %10 = vector.extract_strided_slice %4 {offsets = [0, 1], sizes = [4, 1], strides = [1, 1]} : vector<4x4xf32> to vector<4x1xf32>
    %11 = vector.extract_strided_slice %1 {offsets = [1, 0], sizes = [1, 16], strides = [1, 1]} : vector<4x16xf32> to vector<1x16xf32>
    %12 = vector.broadcast %10 : vector<4x1xf32> to vector<4x16xf32>
    %13 = vector.broadcast %11 : vector<1x16xf32> to vector<4x16xf32>
    %14 = arith.mulf %12, %13 : vector<4x16xf32>
    %15 = arith.addf %9, %14 : vector<4x16xf32>
    %16 = vector.extract_strided_slice %4 {offsets = [0, 2], sizes = [4, 1], strides = [1, 1]} : vector<4x4xf32> to vector<4x1xf32>
    %17 = vector.extract_strided_slice %1 {offsets = [2, 0], sizes = [1, 16], strides = [1, 1]} : vector<4x16xf32> to vector<1x16xf32>
    %18 = vector.broadcast %16 : vector<4x1xf32> to vector<4x16xf32>
    %19 = vector.broadcast %17 : vector<1x16xf32> to vector<4x16xf32>
    %20 = arith.mulf %18, %19 : vector<4x16xf32>
    %21 = arith.addf %15, %20 : vector<4x16xf32>
    %22 = vector.extract_strided_slice %4 {offsets = [0, 3], sizes = [4, 1], strides = [1, 1]} : vector<4x4xf32> to vector<4x1xf32>
    %23 = vector.extract_strided_slice %1 {offsets = [3, 0], sizes = [1, 16], strides = [1, 1]} : vector<4x16xf32> to vector<1x16xf32>
    %24 = vector.broadcast %22 : vector<4x1xf32> to vector<4x16xf32>
    %25 = vector.broadcast %23 : vector<1x16xf32> to vector<4x16xf32>
    %26 = arith.mulf %24, %25 : vector<4x16xf32>
    %27 = arith.addf %21, %26 : vector<4x16xf32>
    %c0_5 = arith.constant 0 : index
    %c0_6 = arith.constant 0 : index
    %c0_7 = arith.constant 0 : index
    %28 = vector.load %arg4[%c0_5, %c0_6, %c0_7] : memref<13x4x1xf32, #tpu.memory_space<vmem>>, vector<1x4x1xf32>
    %29 = vector.shape_cast %28 : vector<1x4x1xf32> to vector<4x1xf32>
    %30 = vector.broadcast %29 : vector<4x1xf32> to vector<4x16xf32>
    %31 = arith.addf %27, %30 : vector<4x16xf32>
    %cst = arith.constant 0.000000e+00 : f32
    %32 = vector.broadcast %cst : f32 to vector<4x16xf32>
    %33 = arith.maximumf %31, %32 : vector<4x16xf32>
    %c1 = arith.constant 1 : index
    %c0_8 = arith.constant 0 : index
    %c0_9 = arith.constant 0 : index
    %34 = vector.load %arg3[%c1, %c0_8, %c0_9] : memref<13x4x4xf32, #tpu.memory_space<vmem>>, vector<1x4x4xf32>
    %35 = vector.shape_cast %34 : vector<1x4x4xf32> to vector<4x4xf32>
    %36 = vector.extract_strided_slice %35 {offsets = [0, 0], sizes = [4, 1], strides = [1, 1]} : vector<4x4xf32> to vector<4x1xf32>
    %37 = vector.extract_strided_slice %33 {offsets = [0, 0], sizes = [1, 16], strides = [1, 1]} : vector<4x16xf32> to vector<1x16xf32>
    %38 = vector.broadcast %36 : vector<4x1xf32> to vector<4x16xf32>
    %39 = vector.broadcast %37 : vector<1x16xf32> to vector<4x16xf32>
    %40 = arith.mulf %38, %39 : vector<4x16xf32>
    %41 = vector.extract_strided_slice %35 {offsets = [0, 1], sizes = [4, 1], strides = [1, 1]} : vector<4x4xf32> to vector<4x1xf32>
    %42 = vector.extract_strided_slice %33 {offsets = [1, 0], sizes = [1, 16], strides = [1, 1]} : vector<4x16xf32> to vector<1x16xf32>
    %43 = vector.broadcast %41 : vector<4x1xf32> to vector<4x16xf32>
    %44 = vector.broadcast %42 : vector<1x16xf32> to vector<4x16xf32>
    %45 = arith.mulf %43, %44 : vector<4x16xf32>
    %46 = arith.addf %40, %45 : vector<4x16xf32>
    %47 = vector.extract_strided_slice %35 {offsets = [0, 2], sizes = [4, 1], strides = [1, 1]} : vector<4x4xf32> to vector<4x1xf32>
    %48 = vector.extract_strided_slice %33 {offsets = [2, 0], sizes = [1, 16], strides = [1, 1]} : vector<4x16xf32> to vector<1x16xf32>
    %49 = vector.broadcast %47 : vector<4x1xf32> to vector<4x16xf32>
    %50 = vector.broadcast %48 : vector<1x16xf32> to vector<4x16xf32>
    %51 = arith.mulf %49, %50 : vector<4x16xf32>
    %52 = arith.addf %46, %51 : vector<4x16xf32>
    %53 = vector.extract_strided_slice %35 {offsets = [0, 3], sizes = [4, 1], strides = [1, 1]} : vector<4x4xf32> to vector<4x1xf32>
    %54 = vector.extract_strided_slice %33 {offsets = [3, 0], sizes = [1, 16], strides = [1, 1]} : vector<4x16xf32> to vector<1x16xf32>
    %55 = vector.broadcast %53 : vector<4x1xf32> to vector<4x16xf32>
    %56 = vector.broadcast %54 : vector<1x16xf32> to vector<4x16xf32>
    %57 = arith.mulf %55, %56 : vector<4x16xf32>
    %58 = arith.addf %52, %57 : vector<4x16xf32>
    %c1_10 = arith.constant 1 : index
    %c0_11 = arith.constant 0 : index
    %c0_12 = arith.constant 0 : index
    %59 = vector.load %arg4[%c1_10, %c0_11, %c0_12] : memref<13x4x1xf32, #tpu.memory_space<vmem>>, vector<1x4x1xf32>
    %60 = vector.shape_cast %59 : vector<1x4x1xf32> to vector<4x1xf32>
    %61 = vector.broadcast %60 : vector<4x1xf32> to vector<4x16xf32>
    %62 = arith.addf %58, %61 : vector<4x16xf32>
    %cst_13 = arith.constant 0.000000e+00 : f32
    %63 = vector.broadcast %cst_13 : f32 to vector<4x16xf32>
    %64 = arith.maximumf %62, %63 : vector<4x16xf32>
    %c2 = arith.constant 2 : index
    %c0_14 = arith.constant 0 : index
    %c0_15 = arith.constant 0 : index
    %65 = vector.load %arg3[%c2, %c0_14, %c0_15] : memref<13x4x4xf32, #tpu.memory_space<vmem>>, vector<1x4x4xf32>
    %66 = vector.shape_cast %65 : vector<1x4x4xf32> to vector<4x4xf32>
    %67 = vector.extract_strided_slice %66 {offsets = [0, 0], sizes = [4, 1], strides = [1, 1]} : vector<4x4xf32> to vector<4x1xf32>
    %68 = vector.extract_strided_slice %64 {offsets = [0, 0], sizes = [1, 16], strides = [1, 1]} : vector<4x16xf32> to vector<1x16xf32>
    %69 = vector.broadcast %67 : vector<4x1xf32> to vector<4x16xf32>
    %70 = vector.broadcast %68 : vector<1x16xf32> to vector<4x16xf32>
    %71 = arith.mulf %69, %70 : vector<4x16xf32>
    %72 = vector.extract_strided_slice %66 {offsets = [0, 1], sizes = [4, 1], strides = [1, 1]} : vector<4x4xf32> to vector<4x1xf32>
    %73 = vector.extract_strided_slice %64 {offsets = [1, 0], sizes = [1, 16], strides = [1, 1]} : vector<4x16xf32> to vector<1x16xf32>
    %74 = vector.broadcast %72 : vector<4x1xf32> to vector<4x16xf32>
    %75 = vector.broadcast %73 : vector<1x16xf32> to vector<4x16xf32>
    %76 = arith.mulf %74, %75 : vector<4x16xf32>
    %77 = arith.addf %71, %76 : vector<4x16xf32>
    %78 = vector.extract_strided_slice %66 {offsets = [0, 2], sizes = [4, 1], strides = [1, 1]} : vector<4x4xf32> to vector<4x1xf32>
    %79 = vector.extract_strided_slice %64 {offsets = [2, 0], sizes = [1, 16], strides = [1, 1]} : vector<4x16xf32> to vector<1x16xf32>
    %80 = vector.broadcast %78 : vector<4x1xf32> to vector<4x16xf32>
    %81 = vector.broadcast %79 : vector<1x16xf32> to vector<4x16xf32>
    %82 = arith.mulf %80, %81 : vector<4x16xf32>
    %83 = arith.addf %77, %82 : vector<4x16xf32>
    %84 = vector.extract_strided_slice %66 {offsets = [0, 3], sizes = [4, 1], strides = [1, 1]} : vector<4x4xf32> to vector<4x1xf32>
    %85 = vector.extract_strided_slice %64 {offsets = [3, 0], sizes = [1, 16], strides = [1, 1]} : vector<4x16xf32> to vector<1x16xf32>
    %86 = vector.broadcast %84 : vector<4x1xf32> to vector<4x16xf32>
    %87 = vector.broadcast %85 : vector<1x16xf32> to vector<4x16xf32>
    %88 = arith.mulf %86, %87 : vector<4x16xf32>
    %89 = arith.addf %83, %88 : vector<4x16xf32>
    %c2_16 = arith.constant 2 : index
    %c0_17 = arith.constant 0 : index
    %c0_18 = arith.constant 0 : index
    %90 = vector.load %arg4[%c2_16, %c0_17, %c0_18] : memref<13x4x1xf32, #tpu.memory_space<vmem>>, vector<1x4x1xf32>
    %91 = vector.shape_cast %90 : vector<1x4x1xf32> to vector<4x1xf32>
    %92 = vector.broadcast %91 : vector<4x1xf32> to vector<4x16xf32>
    %93 = arith.addf %89, %92 : vector<4x16xf32>
    %cst_19 = arith.constant 0.000000e+00 : f32
    %94 = vector.broadcast %cst_19 : f32 to vector<4x16xf32>
    %95 = arith.maximumf %93, %94 : vector<4x16xf32>
    %96 = arith.addf %95, %2 : vector<4x16xf32>
    %c3 = arith.constant 3 : index
    %c0_20 = arith.constant 0 : index
    %c0_21 = arith.constant 0 : index
    %97 = vector.load %arg3[%c3, %c0_20, %c0_21] : memref<13x4x4xf32, #tpu.memory_space<vmem>>, vector<1x4x4xf32>
    %98 = vector.shape_cast %97 : vector<1x4x4xf32> to vector<4x4xf32>
    %99 = vector.extract_strided_slice %98 {offsets = [0, 0], sizes = [4, 1], strides = [1, 1]} : vector<4x4xf32> to vector<4x1xf32>
    %100 = vector.extract_strided_slice %96 {offsets = [0, 0], sizes = [1, 16], strides = [1, 1]} : vector<4x16xf32> to vector<1x16xf32>
    %101 = vector.broadcast %99 : vector<4x1xf32> to vector<4x16xf32>
    %102 = vector.broadcast %100 : vector<1x16xf32> to vector<4x16xf32>
    %103 = arith.mulf %101, %102 : vector<4x16xf32>
    %104 = vector.extract_strided_slice %98 {offsets = [0, 1], sizes = [4, 1], strides = [1, 1]} : vector<4x4xf32> to vector<4x1xf32>
    %105 = vector.extract_strided_slice %96 {offsets = [1, 0], sizes = [1, 16], strides = [1, 1]} : vector<4x16xf32> to vector<1x16xf32>
    %106 = vector.broadcast %104 : vector<4x1xf32> to vector<4x16xf32>
    %107 = vector.broadcast %105 : vector<1x16xf32> to vector<4x16xf32>
    %108 = arith.mulf %106, %107 : vector<4x16xf32>
    %109 = arith.addf %103, %108 : vector<4x16xf32>
    %110 = vector.extract_strided_slice %98 {offsets = [0, 2], sizes = [4, 1], strides = [1, 1]} : vector<4x4xf32> to vector<4x1xf32>
    %111 = vector.extract_strided_slice %96 {offsets = [2, 0], sizes = [1, 16], strides = [1, 1]} : vector<4x16xf32> to vector<1x16xf32>
    %112 = vector.broadcast %110 : vector<4x1xf32> to vector<4x16xf32>
    %113 = vector.broadcast %111 : vector<1x16xf32> to vector<4x16xf32>
    %114 = arith.mulf %112, %113 : vector<4x16xf32>
    %115 = arith.addf %109, %114 : vector<4x16xf32>
    %116 = vector.extract_strided_slice %98 {offsets = [0, 3], sizes = [4, 1], strides = [1, 1]} : vector<4x4xf32> to vector<4x1xf32>
    %117 = vector.extract_strided_slice %96 {offsets = [3, 0], sizes = [1, 16], strides = [1, 1]} : vector<4x16xf32> to vector<1x16xf32>
    %118 = vector.broadcast %116 : vector<4x1xf32> to vector<4x16xf32>
    %119 = vector.broadcast %117 : vector<1x16xf32> to vector<4x16xf32>
    %120 = arith.mulf %118, %119 : vector<4x16xf32>
    %121 = arith.addf %115, %120 : vector<4x16xf32>
    %c3_22 = arith.constant 3 : index
    %c0_23 = arith.constant 0 : index
    %c0_24 = arith.constant 0 : index
    %122 = vector.load %arg4[%c3_22, %c0_23, %c0_24] : memref<13x4x1xf32, #tpu.memory_space<vmem>>, vector<1x4x1xf32>
    %123 = vector.shape_cast %122 : vector<1x4x1xf32> to vector<4x1xf32>
    %124 = vector.broadcast %123 : vector<4x1xf32> to vector<4x16xf32>
    %125 = arith.addf %121, %124 : vector<4x16xf32>
    %cst_25 = arith.constant 0.000000e+00 : f32
    %126 = vector.broadcast %cst_25 : f32 to vector<4x16xf32>
    %127 = arith.maximumf %125, %126 : vector<4x16xf32>
    %128 = arith.addf %127, %127 : vector<4x16xf32>
    %c4 = arith.constant 4 : index
    %c0_26 = arith.constant 0 : index
    %c0_27 = arith.constant 0 : index
    %129 = vector.load %arg3[%c4, %c0_26, %c0_27] : memref<13x4x4xf32, #tpu.memory_space<vmem>>, vector<1x4x4xf32>
    %130 = vector.shape_cast %129 : vector<1x4x4xf32> to vector<4x4xf32>
    %131 = vector.extract_strided_slice %130 {offsets = [0, 0], sizes = [4, 1], strides = [1, 1]} : vector<4x4xf32> to vector<4x1xf32>
    %132 = vector.extract_strided_slice %127 {offsets = [0, 0], sizes = [1, 16], strides = [1, 1]} : vector<4x16xf32> to vector<1x16xf32>
    %133 = vector.broadcast %131 : vector<4x1xf32> to vector<4x16xf32>
    %134 = vector.broadcast %132 : vector<1x16xf32> to vector<4x16xf32>
    %135 = arith.mulf %133, %134 : vector<4x16xf32>
    %136 = vector.extract_strided_slice %130 {offsets = [0, 1], sizes = [4, 1], strides = [1, 1]} : vector<4x4xf32> to vector<4x1xf32>
    %137 = vector.extract_strided_slice %127 {offsets = [1, 0], sizes = [1, 16], strides = [1, 1]} : vector<4x16xf32> to vector<1x16xf32>
    %138 = vector.broadcast %136 : vector<4x1xf32> to vector<4x16xf32>
    %139 = vector.broadcast %137 : vector<1x16xf32> to vector<4x16xf32>
    %140 = arith.mulf %138, %139 : vector<4x16xf32>
    %141 = arith.addf %135, %140 : vector<4x16xf32>
    %142 = vector.extract_strided_slice %130 {offsets = [0, 2], sizes = [4, 1], strides = [1, 1]} : vector<4x4xf32> to vector<4x1xf32>
    %143 = vector.extract_strided_slice %127 {offsets = [2, 0], sizes = [1, 16], strides = [1, 1]} : vector<4x16xf32> to vector<1x16xf32>
    %144 = vector.broadcast %142 : vector<4x1xf32> to vector<4x16xf32>
    %145 = vector.broadcast %143 : vector<1x16xf32> to vector<4x16xf32>
    %146 = arith.mulf %144, %145 : vector<4x16xf32>
    %147 = arith.addf %141, %146 : vector<4x16xf32>
    %148 = vector.extract_strided_slice %130 {offsets = [0, 3], sizes = [4, 1], strides = [1, 1]} : vector<4x4xf32> to vector<4x1xf32>
    %149 = vector.extract_strided_slice %127 {offsets = [3, 0], sizes = [1, 16], strides = [1, 1]} : vector<4x16xf32> to vector<1x16xf32>
    %150 = vector.broadcast %148 : vector<4x1xf32> to vector<4x16xf32>
    %151 = vector.broadcast %149 : vector<1x16xf32> to vector<4x16xf32>
    %152 = arith.mulf %150, %151 : vector<4x16xf32>
    %153 = arith.addf %147, %152 : vector<4x16xf32>
    %c4_28 = arith.constant 4 : index
    %c0_29 = arith.constant 0 : index
    %c0_30 = arith.constant 0 : index
    %154 = vector.load %arg4[%c4_28, %c0_29, %c0_30] : memref<13x4x1xf32, #tpu.memory_space<vmem>>, vector<1x4x1xf32>
    %155 = vector.shape_cast %154 : vector<1x4x1xf32> to vector<4x1xf32>
    %156 = vector.broadcast %155 : vector<4x1xf32> to vector<4x16xf32>
    %157 = arith.addf %153, %156 : vector<4x16xf32>
    %cst_31 = arith.constant 0.000000e+00 : f32
    %158 = vector.broadcast %cst_31 : f32 to vector<4x16xf32>
    %159 = arith.maximumf %157, %158 : vector<4x16xf32>
    %c5 = arith.constant 5 : index
    %c0_32 = arith.constant 0 : index
    %c0_33 = arith.constant 0 : index
    %160 = vector.load %arg3[%c5, %c0_32, %c0_33] : memref<13x4x4xf32, #tpu.memory_space<vmem>>, vector<1x4x4xf32>
    %161 = vector.shape_cast %160 : vector<1x4x4xf32> to vector<4x4xf32>
    %162 = vector.extract_strided_slice %161 {offsets = [0, 0], sizes = [4, 1], strides = [1, 1]} : vector<4x4xf32> to vector<4x1xf32>
    %163 = vector.extract_strided_slice %159 {offsets = [0, 0], sizes = [1, 16], strides = [1, 1]} : vector<4x16xf32> to vector<1x16xf32>
    %164 = vector.broadcast %162 : vector<4x1xf32> to vector<4x16xf32>
    %165 = vector.broadcast %163 : vector<1x16xf32> to vector<4x16xf32>
    %166 = arith.mulf %164, %165 : vector<4x16xf32>
    %167 = vector.extract_strided_slice %161 {offsets = [0, 1], sizes = [4, 1], strides = [1, 1]} : vector<4x4xf32> to vector<4x1xf32>
    %168 = vector.extract_strided_slice %159 {offsets = [1, 0], sizes = [1, 16], strides = [1, 1]} : vector<4x16xf32> to vector<1x16xf32>
    %169 = vector.broadcast %167 : vector<4x1xf32> to vector<4x16xf32>
    %170 = vector.broadcast %168 : vector<1x16xf32> to vector<4x16xf32>
    %171 = arith.mulf %169, %170 : vector<4x16xf32>
    %172 = arith.addf %166, %171 : vector<4x16xf32>
    %173 = vector.extract_strided_slice %161 {offsets = [0, 2], sizes = [4, 1], strides = [1, 1]} : vector<4x4xf32> to vector<4x1xf32>
    %174 = vector.extract_strided_slice %159 {offsets = [2, 0], sizes = [1, 16], strides = [1, 1]} : vector<4x16xf32> to vector<1x16xf32>
    %175 = vector.broadcast %173 : vector<4x1xf32> to vector<4x16xf32>
    %176 = vector.broadcast %174 : vector<1x16xf32> to vector<4x16xf32>
    %177 = arith.mulf %175, %176 : vector<4x16xf32>
    %178 = arith.addf %172, %177 : vector<4x16xf32>
    %179 = vector.extract_strided_slice %161 {offsets = [0, 3], sizes = [4, 1], strides = [1, 1]} : vector<4x4xf32> to vector<4x1xf32>
    %180 = vector.extract_strided_slice %159 {offsets = [3, 0], sizes = [1, 16], strides = [1, 1]} : vector<4x16xf32> to vector<1x16xf32>
    %181 = vector.broadcast %179 : vector<4x1xf32> to vector<4x16xf32>
    %182 = vector.broadcast %180 : vector<1x16xf32> to vector<4x16xf32>
    %183 = arith.mulf %181, %182 : vector<4x16xf32>
    %184 = arith.addf %178, %183 : vector<4x16xf32>
    %c5_34 = arith.constant 5 : index
    %c0_35 = arith.constant 0 : index
    %c0_36 = arith.constant 0 : index
    %185 = vector.load %arg4[%c5_34, %c0_35, %c0_36] : memref<13x4x1xf32, #tpu.memory_space<vmem>>, vector<1x4x1xf32>
    %186 = vector.shape_cast %185 : vector<1x4x1xf32> to vector<4x1xf32>
    %187 = vector.broadcast %186 : vector<4x1xf32> to vector<4x16xf32>
    %188 = arith.addf %184, %187 : vector<4x16xf32>
    %cst_37 = arith.constant 0.000000e+00 : f32
    %189 = vector.broadcast %cst_37 : f32 to vector<4x16xf32>
    %190 = arith.maximumf %188, %189 : vector<4x16xf32>
    %c6 = arith.constant 6 : index
    %c0_38 = arith.constant 0 : index
    %c0_39 = arith.constant 0 : index
    %191 = vector.load %arg3[%c6, %c0_38, %c0_39] : memref<13x4x4xf32, #tpu.memory_space<vmem>>, vector<1x4x4xf32>
    %192 = vector.shape_cast %191 : vector<1x4x4xf32> to vector<4x4xf32>
    %193 = vector.extract_strided_slice %192 {offsets = [0, 0], sizes = [4, 1], strides = [1, 1]} : vector<4x4xf32> to vector<4x1xf32>
    %194 = vector.extract_strided_slice %190 {offsets = [0, 0], sizes = [1, 16], strides = [1, 1]} : vector<4x16xf32> to vector<1x16xf32>
    %195 = vector.broadcast %193 : vector<4x1xf32> to vector<4x16xf32>
    %196 = vector.broadcast %194 : vector<1x16xf32> to vector<4x16xf32>
    %197 = arith.mulf %195, %196 : vector<4x16xf32>
    %198 = vector.extract_strided_slice %192 {offsets = [0, 1], sizes = [4, 1], strides = [1, 1]} : vector<4x4xf32> to vector<4x1xf32>
    %199 = vector.extract_strided_slice %190 {offsets = [1, 0], sizes = [1, 16], strides = [1, 1]} : vector<4x16xf32> to vector<1x16xf32>
    %200 = vector.broadcast %198 : vector<4x1xf32> to vector<4x16xf32>
    %201 = vector.broadcast %199 : vector<1x16xf32> to vector<4x16xf32>
    %202 = arith.mulf %200, %201 : vector<4x16xf32>
    %203 = arith.addf %197, %202 : vector<4x16xf32>
    %204 = vector.extract_strided_slice %192 {offsets = [0, 2], sizes = [4, 1], strides = [1, 1]} : vector<4x4xf32> to vector<4x1xf32>
    %205 = vector.extract_strided_slice %190 {offsets = [2, 0], sizes = [1, 16], strides = [1, 1]} : vector<4x16xf32> to vector<1x16xf32>
    %206 = vector.broadcast %204 : vector<4x1xf32> to vector<4x16xf32>
    %207 = vector.broadcast %205 : vector<1x16xf32> to vector<4x16xf32>
    %208 = arith.mulf %206, %207 : vector<4x16xf32>
    %209 = arith.addf %203, %208 : vector<4x16xf32>
    %210 = vector.extract_strided_slice %192 {offsets = [0, 3], sizes = [4, 1], strides = [1, 1]} : vector<4x4xf32> to vector<4x1xf32>
    %211 = vector.extract_strided_slice %190 {offsets = [3, 0], sizes = [1, 16], strides = [1, 1]} : vector<4x16xf32> to vector<1x16xf32>
    %212 = vector.broadcast %210 : vector<4x1xf32> to vector<4x16xf32>
    %213 = vector.broadcast %211 : vector<1x16xf32> to vector<4x16xf32>
    %214 = arith.mulf %212, %213 : vector<4x16xf32>
    %215 = arith.addf %209, %214 : vector<4x16xf32>
    %c6_40 = arith.constant 6 : index
    %c0_41 = arith.constant 0 : index
    %c0_42 = arith.constant 0 : index
    %216 = vector.load %arg4[%c6_40, %c0_41, %c0_42] : memref<13x4x1xf32, #tpu.memory_space<vmem>>, vector<1x4x1xf32>
    %217 = vector.shape_cast %216 : vector<1x4x1xf32> to vector<4x1xf32>
    %218 = vector.broadcast %217 : vector<4x1xf32> to vector<4x16xf32>
    %219 = arith.addf %215, %218 : vector<4x16xf32>
    %cst_43 = arith.constant 0.000000e+00 : f32
    %220 = vector.broadcast %cst_43 : f32 to vector<4x16xf32>
    %221 = arith.maximumf %219, %220 : vector<4x16xf32>
    %222 = arith.addf %221, %128 : vector<4x16xf32>
    %c7 = arith.constant 7 : index
    %c0_44 = arith.constant 0 : index
    %c0_45 = arith.constant 0 : index
    %223 = vector.load %arg3[%c7, %c0_44, %c0_45] : memref<13x4x4xf32, #tpu.memory_space<vmem>>, vector<1x4x4xf32>
    %224 = vector.shape_cast %223 : vector<1x4x4xf32> to vector<4x4xf32>
    %225 = vector.extract_strided_slice %224 {offsets = [0, 0], sizes = [4, 1], strides = [1, 1]} : vector<4x4xf32> to vector<4x1xf32>
    %226 = vector.extract_strided_slice %222 {offsets = [0, 0], sizes = [1, 16], strides = [1, 1]} : vector<4x16xf32> to vector<1x16xf32>
    %227 = vector.broadcast %225 : vector<4x1xf32> to vector<4x16xf32>
    %228 = vector.broadcast %226 : vector<1x16xf32> to vector<4x16xf32>
    %229 = arith.mulf %227, %228 : vector<4x16xf32>
    %230 = vector.extract_strided_slice %224 {offsets = [0, 1], sizes = [4, 1], strides = [1, 1]} : vector<4x4xf32> to vector<4x1xf32>
    %231 = vector.extract_strided_slice %222 {offsets = [1, 0], sizes = [1, 16], strides = [1, 1]} : vector<4x16xf32> to vector<1x16xf32>
    %232 = vector.broadcast %230 : vector<4x1xf32> to vector<4x16xf32>
    %233 = vector.broadcast %231 : vector<1x16xf32> to vector<4x16xf32>
    %234 = arith.mulf %232, %233 : vector<4x16xf32>
    %235 = arith.addf %229, %234 : vector<4x16xf32>
    %236 = vector.extract_strided_slice %224 {offsets = [0, 2], sizes = [4, 1], strides = [1, 1]} : vector<4x4xf32> to vector<4x1xf32>
    %237 = vector.extract_strided_slice %222 {offsets = [2, 0], sizes = [1, 16], strides = [1, 1]} : vector<4x16xf32> to vector<1x16xf32>
    %238 = vector.broadcast %236 : vector<4x1xf32> to vector<4x16xf32>
    %239 = vector.broadcast %237 : vector<1x16xf32> to vector<4x16xf32>
    %240 = arith.mulf %238, %239 : vector<4x16xf32>
    %241 = arith.addf %235, %240 : vector<4x16xf32>
    %242 = vector.extract_strided_slice %224 {offsets = [0, 3], sizes = [4, 1], strides = [1, 1]} : vector<4x4xf32> to vector<4x1xf32>
    %243 = vector.extract_strided_slice %222 {offsets = [3, 0], sizes = [1, 16], strides = [1, 1]} : vector<4x16xf32> to vector<1x16xf32>
    %244 = vector.broadcast %242 : vector<4x1xf32> to vector<4x16xf32>
    %245 = vector.broadcast %243 : vector<1x16xf32> to vector<4x16xf32>
    %246 = arith.mulf %244, %245 : vector<4x16xf32>
    %247 = arith.addf %241, %246 : vector<4x16xf32>
    %c7_46 = arith.constant 7 : index
    %c0_47 = arith.constant 0 : index
    %c0_48 = arith.constant 0 : index
    %248 = vector.load %arg4[%c7_46, %c0_47, %c0_48] : memref<13x4x1xf32, #tpu.memory_space<vmem>>, vector<1x4x1xf32>
    %249 = vector.shape_cast %248 : vector<1x4x1xf32> to vector<4x1xf32>
    %250 = vector.broadcast %249 : vector<4x1xf32> to vector<4x16xf32>
    %251 = arith.addf %247, %250 : vector<4x16xf32>
    %cst_49 = arith.constant 0.000000e+00 : f32
    %252 = vector.broadcast %cst_49 : f32 to vector<4x16xf32>
    %253 = arith.maximumf %251, %252 : vector<4x16xf32>
    %254 = arith.addf %253, %253 : vector<4x16xf32>
    %c8 = arith.constant 8 : index
    %c0_50 = arith.constant 0 : index
    %c0_51 = arith.constant 0 : index
    %255 = vector.load %arg3[%c8, %c0_50, %c0_51] : memref<13x4x4xf32, #tpu.memory_space<vmem>>, vector<1x4x4xf32>
    %256 = vector.shape_cast %255 : vector<1x4x4xf32> to vector<4x4xf32>
    %257 = vector.extract_strided_slice %256 {offsets = [0, 0], sizes = [4, 1], strides = [1, 1]} : vector<4x4xf32> to vector<4x1xf32>
    %258 = vector.extract_strided_slice %253 {offsets = [0, 0], sizes = [1, 16], strides = [1, 1]} : vector<4x16xf32> to vector<1x16xf32>
    %259 = vector.broadcast %257 : vector<4x1xf32> to vector<4x16xf32>
    %260 = vector.broadcast %258 : vector<1x16xf32> to vector<4x16xf32>
    %261 = arith.mulf %259, %260 : vector<4x16xf32>
    %262 = vector.extract_strided_slice %256 {offsets = [0, 1], sizes = [4, 1], strides = [1, 1]} : vector<4x4xf32> to vector<4x1xf32>
    %263 = vector.extract_strided_slice %253 {offsets = [1, 0], sizes = [1, 16], strides = [1, 1]} : vector<4x16xf32> to vector<1x16xf32>
    %264 = vector.broadcast %262 : vector<4x1xf32> to vector<4x16xf32>
    %265 = vector.broadcast %263 : vector<1x16xf32> to vector<4x16xf32>
    %266 = arith.mulf %264, %265 : vector<4x16xf32>
    %267 = arith.addf %261, %266 : vector<4x16xf32>
    %268 = vector.extract_strided_slice %256 {offsets = [0, 2], sizes = [4, 1], strides = [1, 1]} : vector<4x4xf32> to vector<4x1xf32>
    %269 = vector.extract_strided_slice %253 {offsets = [2, 0], sizes = [1, 16], strides = [1, 1]} : vector<4x16xf32> to vector<1x16xf32>
    %270 = vector.broadcast %268 : vector<4x1xf32> to vector<4x16xf32>
    %271 = vector.broadcast %269 : vector<1x16xf32> to vector<4x16xf32>
    %272 = arith.mulf %270, %271 : vector<4x16xf32>
    %273 = arith.addf %267, %272 : vector<4x16xf32>
    %274 = vector.extract_strided_slice %256 {offsets = [0, 3], sizes = [4, 1], strides = [1, 1]} : vector<4x4xf32> to vector<4x1xf32>
    %275 = vector.extract_strided_slice %253 {offsets = [3, 0], sizes = [1, 16], strides = [1, 1]} : vector<4x16xf32> to vector<1x16xf32>
    %276 = vector.broadcast %274 : vector<4x1xf32> to vector<4x16xf32>
    %277 = vector.broadcast %275 : vector<1x16xf32> to vector<4x16xf32>
    %278 = arith.mulf %276, %277 : vector<4x16xf32>
    %279 = arith.addf %273, %278 : vector<4x16xf32>
    %c8_52 = arith.constant 8 : index
    %c0_53 = arith.constant 0 : index
    %c0_54 = arith.constant 0 : index
    %280 = vector.load %arg4[%c8_52, %c0_53, %c0_54] : memref<13x4x1xf32, #tpu.memory_space<vmem>>, vector<1x4x1xf32>
    %281 = vector.shape_cast %280 : vector<1x4x1xf32> to vector<4x1xf32>
    %282 = vector.broadcast %281 : vector<4x1xf32> to vector<4x16xf32>
    %283 = arith.addf %279, %282 : vector<4x16xf32>
    %cst_55 = arith.constant 0.000000e+00 : f32
    %284 = vector.broadcast %cst_55 : f32 to vector<4x16xf32>
    %285 = arith.maximumf %283, %284 : vector<4x16xf32>
    %c9 = arith.constant 9 : index
    %c0_56 = arith.constant 0 : index
    %c0_57 = arith.constant 0 : index
    %286 = vector.load %arg3[%c9, %c0_56, %c0_57] : memref<13x4x4xf32, #tpu.memory_space<vmem>>, vector<1x4x4xf32>
    %287 = vector.shape_cast %286 : vector<1x4x4xf32> to vector<4x4xf32>
    %288 = vector.extract_strided_slice %287 {offsets = [0, 0], sizes = [4, 1], strides = [1, 1]} : vector<4x4xf32> to vector<4x1xf32>
    %289 = vector.extract_strided_slice %285 {offsets = [0, 0], sizes = [1, 16], strides = [1, 1]} : vector<4x16xf32> to vector<1x16xf32>
    %290 = vector.broadcast %288 : vector<4x1xf32> to vector<4x16xf32>
    %291 = vector.broadcast %289 : vector<1x16xf32> to vector<4x16xf32>
    %292 = arith.mulf %290, %291 : vector<4x16xf32>
    %293 = vector.extract_strided_slice %287 {offsets = [0, 1], sizes = [4, 1], strides = [1, 1]} : vector<4x4xf32> to vector<4x1xf32>
    %294 = vector.extract_strided_slice %285 {offsets = [1, 0], sizes = [1, 16], strides = [1, 1]} : vector<4x16xf32> to vector<1x16xf32>
    %295 = vector.broadcast %293 : vector<4x1xf32> to vector<4x16xf32>
    %296 = vector.broadcast %294 : vector<1x16xf32> to vector<4x16xf32>
    %297 = arith.mulf %295, %296 : vector<4x16xf32>
    %298 = arith.addf %292, %297 : vector<4x16xf32>
    %299 = vector.extract_strided_slice %287 {offsets = [0, 2], sizes = [4, 1], strides = [1, 1]} : vector<4x4xf32> to vector<4x1xf32>
    %300 = vector.extract_strided_slice %285 {offsets = [2, 0], sizes = [1, 16], strides = [1, 1]} : vector<4x16xf32> to vector<1x16xf32>
    %301 = vector.broadcast %299 : vector<4x1xf32> to vector<4x16xf32>
    %302 = vector.broadcast %300 : vector<1x16xf32> to vector<4x16xf32>
    %303 = arith.mulf %301, %302 : vector<4x16xf32>
    %304 = arith.addf %298, %303 : vector<4x16xf32>
    %305 = vector.extract_strided_slice %287 {offsets = [0, 3], sizes = [4, 1], strides = [1, 1]} : vector<4x4xf32> to vector<4x1xf32>
    %306 = vector.extract_strided_slice %285 {offsets = [3, 0], sizes = [1, 16], strides = [1, 1]} : vector<4x16xf32> to vector<1x16xf32>
    %307 = vector.broadcast %305 : vector<4x1xf32> to vector<4x16xf32>
    %308 = vector.broadcast %306 : vector<1x16xf32> to vector<4x16xf32>
    %309 = arith.mulf %307, %308 : vector<4x16xf32>
    %310 = arith.addf %304, %309 : vector<4x16xf32>
    %c9_58 = arith.constant 9 : index
    %c0_59 = arith.constant 0 : index
    %c0_60 = arith.constant 0 : index
    %311 = vector.load %arg4[%c9_58, %c0_59, %c0_60] : memref<13x4x1xf32, #tpu.memory_space<vmem>>, vector<1x4x1xf32>
    %312 = vector.shape_cast %311 : vector<1x4x1xf32> to vector<4x1xf32>
    %313 = vector.broadcast %312 : vector<4x1xf32> to vector<4x16xf32>
    %314 = arith.addf %310, %313 : vector<4x16xf32>
    %cst_61 = arith.constant 0.000000e+00 : f32
    %315 = vector.broadcast %cst_61 : f32 to vector<4x16xf32>
    %316 = arith.maximumf %314, %315 : vector<4x16xf32>
    %c10 = arith.constant 10 : index
    %c0_62 = arith.constant 0 : index
    %c0_63 = arith.constant 0 : index
    %317 = vector.load %arg3[%c10, %c0_62, %c0_63] : memref<13x4x4xf32, #tpu.memory_space<vmem>>, vector<1x4x4xf32>
    %318 = vector.shape_cast %317 : vector<1x4x4xf32> to vector<4x4xf32>
    %319 = vector.extract_strided_slice %318 {offsets = [0, 0], sizes = [4, 1], strides = [1, 1]} : vector<4x4xf32> to vector<4x1xf32>
    %320 = vector.extract_strided_slice %316 {offsets = [0, 0], sizes = [1, 16], strides = [1, 1]} : vector<4x16xf32> to vector<1x16xf32>
    %321 = vector.broadcast %319 : vector<4x1xf32> to vector<4x16xf32>
    %322 = vector.broadcast %320 : vector<1x16xf32> to vector<4x16xf32>
    %323 = arith.mulf %321, %322 : vector<4x16xf32>
    %324 = vector.extract_strided_slice %318 {offsets = [0, 1], sizes = [4, 1], strides = [1, 1]} : vector<4x4xf32> to vector<4x1xf32>
    %325 = vector.extract_strided_slice %316 {offsets = [1, 0], sizes = [1, 16], strides = [1, 1]} : vector<4x16xf32> to vector<1x16xf32>
    %326 = vector.broadcast %324 : vector<4x1xf32> to vector<4x16xf32>
    %327 = vector.broadcast %325 : vector<1x16xf32> to vector<4x16xf32>
    %328 = arith.mulf %326, %327 : vector<4x16xf32>
    %329 = arith.addf %323, %328 : vector<4x16xf32>
    %330 = vector.extract_strided_slice %318 {offsets = [0, 2], sizes = [4, 1], strides = [1, 1]} : vector<4x4xf32> to vector<4x1xf32>
    %331 = vector.extract_strided_slice %316 {offsets = [2, 0], sizes = [1, 16], strides = [1, 1]} : vector<4x16xf32> to vector<1x16xf32>
    %332 = vector.broadcast %330 : vector<4x1xf32> to vector<4x16xf32>
    %333 = vector.broadcast %331 : vector<1x16xf32> to vector<4x16xf32>
    %334 = arith.mulf %332, %333 : vector<4x16xf32>
    %335 = arith.addf %329, %334 : vector<4x16xf32>
    %336 = vector.extract_strided_slice %318 {offsets = [0, 3], sizes = [4, 1], strides = [1, 1]} : vector<4x4xf32> to vector<4x1xf32>
    %337 = vector.extract_strided_slice %316 {offsets = [3, 0], sizes = [1, 16], strides = [1, 1]} : vector<4x16xf32> to vector<1x16xf32>
    %338 = vector.broadcast %336 : vector<4x1xf32> to vector<4x16xf32>
    %339 = vector.broadcast %337 : vector<1x16xf32> to vector<4x16xf32>
    %340 = arith.mulf %338, %339 : vector<4x16xf32>
    %341 = arith.addf %335, %340 : vector<4x16xf32>
    %c10_64 = arith.constant 10 : index
    %c0_65 = arith.constant 0 : index
    %c0_66 = arith.constant 0 : index
    %342 = vector.load %arg4[%c10_64, %c0_65, %c0_66] : memref<13x4x1xf32, #tpu.memory_space<vmem>>, vector<1x4x1xf32>
    %343 = vector.shape_cast %342 : vector<1x4x1xf32> to vector<4x1xf32>
    %344 = vector.broadcast %343 : vector<4x1xf32> to vector<4x16xf32>
    %345 = arith.addf %341, %344 : vector<4x16xf32>
    %cst_67 = arith.constant 0.000000e+00 : f32
    %346 = vector.broadcast %cst_67 : f32 to vector<4x16xf32>
    %347 = arith.maximumf %345, %346 : vector<4x16xf32>
    %348 = arith.addf %347, %254 : vector<4x16xf32>
    %c11 = arith.constant 11 : index
    %c0_68 = arith.constant 0 : index
    %c0_69 = arith.constant 0 : index
    %349 = vector.load %arg3[%c11, %c0_68, %c0_69] : memref<13x4x4xf32, #tpu.memory_space<vmem>>, vector<1x4x4xf32>
    %350 = vector.shape_cast %349 : vector<1x4x4xf32> to vector<4x4xf32>
    %351 = vector.extract_strided_slice %350 {offsets = [0, 0], sizes = [4, 1], strides = [1, 1]} : vector<4x4xf32> to vector<4x1xf32>
    %352 = vector.extract_strided_slice %348 {offsets = [0, 0], sizes = [1, 16], strides = [1, 1]} : vector<4x16xf32> to vector<1x16xf32>
    %353 = vector.broadcast %351 : vector<4x1xf32> to vector<4x16xf32>
    %354 = vector.broadcast %352 : vector<1x16xf32> to vector<4x16xf32>
    %355 = arith.mulf %353, %354 : vector<4x16xf32>
    %356 = vector.extract_strided_slice %350 {offsets = [0, 1], sizes = [4, 1], strides = [1, 1]} : vector<4x4xf32> to vector<4x1xf32>
    %357 = vector.extract_strided_slice %348 {offsets = [1, 0], sizes = [1, 16], strides = [1, 1]} : vector<4x16xf32> to vector<1x16xf32>
    %358 = vector.broadcast %356 : vector<4x1xf32> to vector<4x16xf32>
    %359 = vector.broadcast %357 : vector<1x16xf32> to vector<4x16xf32>
    %360 = arith.mulf %358, %359 : vector<4x16xf32>
    %361 = arith.addf %355, %360 : vector<4x16xf32>
    %362 = vector.extract_strided_slice %350 {offsets = [0, 2], sizes = [4, 1], strides = [1, 1]} : vector<4x4xf32> to vector<4x1xf32>
    %363 = vector.extract_strided_slice %348 {offsets = [2, 0], sizes = [1, 16], strides = [1, 1]} : vector<4x16xf32> to vector<1x16xf32>
    %364 = vector.broadcast %362 : vector<4x1xf32> to vector<4x16xf32>
    %365 = vector.broadcast %363 : vector<1x16xf32> to vector<4x16xf32>
    %366 = arith.mulf %364, %365 : vector<4x16xf32>
    %367 = arith.addf %361, %366 : vector<4x16xf32>
    %368 = vector.extract_strided_slice %350 {offsets = [0, 3], sizes = [4, 1], strides = [1, 1]} : vector<4x4xf32> to vector<4x1xf32>
    %369 = vector.extract_strided_slice %348 {offsets = [3, 0], sizes = [1, 16], strides = [1, 1]} : vector<4x16xf32> to vector<1x16xf32>
    %370 = vector.broadcast %368 : vector<4x1xf32> to vector<4x16xf32>
    %371 = vector.broadcast %369 : vector<1x16xf32> to vector<4x16xf32>
    %372 = arith.mulf %370, %371 : vector<4x16xf32>
    %373 = arith.addf %367, %372 : vector<4x16xf32>
    %c11_70 = arith.constant 11 : index
    %c0_71 = arith.constant 0 : index
    %c0_72 = arith.constant 0 : index
    %374 = vector.load %arg4[%c11_70, %c0_71, %c0_72] : memref<13x4x1xf32, #tpu.memory_space<vmem>>, vector<1x4x1xf32>
    %375 = vector.shape_cast %374 : vector<1x4x1xf32> to vector<4x1xf32>
    %376 = vector.broadcast %375 : vector<4x1xf32> to vector<4x16xf32>
    %377 = arith.addf %373, %376 : vector<4x16xf32>
    %cst_73 = arith.constant 0.000000e+00 : f32
    %378 = vector.broadcast %cst_73 : f32 to vector<4x16xf32>
    %379 = arith.maximumf %377, %378 : vector<4x16xf32>
    %380 = arith.addf %379, %2 : vector<4x16xf32>
    %c12 = arith.constant 12 : index
    %c0_74 = arith.constant 0 : index
    %c0_75 = arith.constant 0 : index
    %381 = vector.load %arg3[%c12, %c0_74, %c0_75] : memref<13x4x4xf32, #tpu.memory_space<vmem>>, vector<1x4x4xf32>
    %382 = vector.shape_cast %381 : vector<1x4x4xf32> to vector<4x4xf32>
    %383 = vector.extract_strided_slice %382 {offsets = [0, 0], sizes = [4, 1], strides = [1, 1]} : vector<4x4xf32> to vector<4x1xf32>
    %384 = vector.extract_strided_slice %380 {offsets = [0, 0], sizes = [1, 16], strides = [1, 1]} : vector<4x16xf32> to vector<1x16xf32>
    %385 = vector.broadcast %383 : vector<4x1xf32> to vector<4x16xf32>
    %386 = vector.broadcast %384 : vector<1x16xf32> to vector<4x16xf32>
    %387 = arith.mulf %385, %386 : vector<4x16xf32>
    %388 = vector.extract_strided_slice %382 {offsets = [0, 1], sizes = [4, 1], strides = [1, 1]} : vector<4x4xf32> to vector<4x1xf32>
    %389 = vector.extract_strided_slice %380 {offsets = [1, 0], sizes = [1, 16], strides = [1, 1]} : vector<4x16xf32> to vector<1x16xf32>
    %390 = vector.broadcast %388 : vector<4x1xf32> to vector<4x16xf32>
    %391 = vector.broadcast %389 : vector<1x16xf32> to vector<4x16xf32>
    %392 = arith.mulf %390, %391 : vector<4x16xf32>
    %393 = arith.addf %387, %392 : vector<4x16xf32>
    %394 = vector.extract_strided_slice %382 {offsets = [0, 2], sizes = [4, 1], strides = [1, 1]} : vector<4x4xf32> to vector<4x1xf32>
    %395 = vector.extract_strided_slice %380 {offsets = [2, 0], sizes = [1, 16], strides = [1, 1]} : vector<4x16xf32> to vector<1x16xf32>
    %396 = vector.broadcast %394 : vector<4x1xf32> to vector<4x16xf32>
    %397 = vector.broadcast %395 : vector<1x16xf32> to vector<4x16xf32>
    %398 = arith.mulf %396, %397 : vector<4x16xf32>
    %399 = arith.addf %393, %398 : vector<4x16xf32>
    %400 = vector.extract_strided_slice %382 {offsets = [0, 3], sizes = [4, 1], strides = [1, 1]} : vector<4x4xf32> to vector<4x1xf32>
    %401 = vector.extract_strided_slice %380 {offsets = [3, 0], sizes = [1, 16], strides = [1, 1]} : vector<4x16xf32> to vector<1x16xf32>
    %402 = vector.broadcast %400 : vector<4x1xf32> to vector<4x16xf32>
    %403 = vector.broadcast %401 : vector<1x16xf32> to vector<4x16xf32>
    %404 = arith.mulf %402, %403 : vector<4x16xf32>
    %405 = arith.addf %399, %404 : vector<4x16xf32>
    %c12_76 = arith.constant 12 : index
    %c0_77 = arith.constant 0 : index
    %c0_78 = arith.constant 0 : index
    %406 = vector.load %arg4[%c12_76, %c0_77, %c0_78] : memref<13x4x1xf32, #tpu.memory_space<vmem>>, vector<1x4x1xf32>
    %407 = vector.shape_cast %406 : vector<1x4x1xf32> to vector<4x1xf32>
    %408 = vector.broadcast %407 : vector<4x1xf32> to vector<4x16xf32>
    %409 = arith.addf %405, %408 : vector<4x16xf32>
    %cst_79 = arith.constant 0.000000e+00 : f32
    %410 = vector.broadcast %cst_79 : f32 to vector<4x16xf32>
    %411 = arith.maximumf %409, %410 : vector<4x16xf32>
    %c0_80 = arith.constant 0 : index
    %c0_81 = arith.constant 0 : index
    %c0_82 = arith.constant 0 : index
    %412 = vector.load %arg5[%c0_80, %c0_81, %c0_82] : memref<1x4x16xf32, #tpu.memory_space<vmem>>, vector<1x4x16xf32>
    %413 = vector.shape_cast %412 : vector<1x4x16xf32> to vector<4x16xf32>
    %414 = vector.shape_cast %411 : vector<4x16xf32> to vector<1x4x16xf32>
    tpu.vector_store %arg5[%c0_80, %c0_81, %c0_82], %414 {strides = array<i32>} : memref<1x4x16xf32, #tpu.memory_space<vmem>>, vector<1x4x16xf32>,
    return
  }
  func.func @transform_0(%arg0: i32, %arg1: i32) -> (i32, i32, i32) {
    %c0_i32 = arith.constant 0 : i32
    %c0_i32_0 = arith.constant 0 : i32
    return %arg0, %c0_i32, %arg1 : i32, i32, i32
  }
  func.func @transform_1(%arg0: i32, %arg1: i32) -> (i32, i32, i32) {
    %c0_i32 = arith.constant 0 : i32
    %c0_i32_0 = arith.constant 0 : i32
    %c0_i32_1 = arith.constant 0 : i32
    %c0_i32_2 = arith.constant 0 : i32
    return %c0_i32, %c0_i32_0, %c0_i32_1 : i32, i32, i32
  }
  func.func @transform_2(%arg0: i32, %arg1: i32) -> (i32, i32, i32) {
    %c0_i32 = arith.constant 0 : i32
    %c0_i32_0 = arith.constant 0 : i32
    %c0_i32_1 = arith.constant 0 : i32
    %c0_i32_2 = arith.constant 0 : i32
    return %c0_i32, %c0_i32_0, %c0_i32_1 : i32, i32, i32
  }
  func.func @transform_3(%arg0: i32, %arg1: i32) -> (i32, i32, i32) {
    %c0_i32 = arith.constant 0 : i32
    %c0_i32_0 = arith.constant 0 : i32
    return %arg0, %c0_i32, %arg1 : i32, i32, i32
  }
}

</mosaic_0001>

<llo_original>
// kernel: basic_block_3.1
$region0: #{basic_block_3.1}
  #allocation0 [shape = 'u32[]', space=smem, size = 0x4, offset = 0x4, fixed_abs, tag = 'smem constant byte address 0x4 - core index']
  #allocation1 [shape = 'u32[144,128]{1,0:T(1,128)}', space=vmem, size = 0x12000, scoped, tag = 'internal scratch']
  %s0 = inlined_call_operand.vmem [shape: f32[2,4,16], index: 0, kind: input, shape index: {}]
  %s1 = inlined_call_operand.vmem [shape: f32[13,4,4], index: 1, kind: input, shape index: {}]
  %s2 = inlined_call_operand.vmem [shape: f32[13,4,1], index: 2, kind: input, shape index: {}]
  %s3 = inlined_call_operand.hbm [shape: f32[2,4,16], index: 3, kind: output, shape index: {}]
  %s4 = sld [smem:[#allocation0]]
  $region45: #{basic_block_3.1} parent=0
    _
  %s6 = ssub.s32 1, %s4
  %s7 = scalar_select 0, %s6, %s4
  $region1: #{basic_block_3.1} parent=0
    #allocation2 [shape = 'u8[4096]{0}', space=vmem, size = 0x1000, scoped, tag = 'output window, operand 0']
    #allocation3 [shape = 's32[2]{0}', space=sflag, size = 0x8, scoped, tag = 'scoped memory for basic_block_3.1']
    %8 = vsyncpa [#allocation3], 0
    %s9 = scalar_lea.sflag [#allocation3], 1
    %10 = vsyncpa %s9, 0
    loop: start=0, step=1, limit=4
    $region2: #{basic_block_3.1} parent=1 // loop_pre_header
      _
    $region3: #{basic_block_3.1} parent=1 // loop_header
      %s12 = sphi 0, %s16
      %p13 = scmp.ge.s32.totalorder %s12, 4
      %s19 = sphi 0, %s31
      %s20 = sphi 0, %s27
      %s21 = sphi 0, %s19
      %s22 = sphi 0, %s20
      %s23 = sphi 0, %s21
      %s24 = sphi 0, %s22
      %s36 = sphi 0, %s38
      %s39 = sphi 0, %s36
      %s40 = sphi 0, %s39
      %s56 = sphi 0, %s40
      %s60 = sphi 0, %s60
      %s62 = sphi 0, %s60
      %s63 = sphi 0, %s62
      %s77 = sphi 0, %s63
      %s81 = sphi 0, %s81
      %s83 = sphi 0, %s81
      %s84 = sphi 0, %s83
      %s98 = sphi 0, %s84
      %s106 = sphi 0, %s108
      %s109 = sphi 0, %s106
      %s110 = sphi 0, %s109
      %s126 = sphi 0, %s110
    $region4: #{basic_block_3.1} parent=1 // loop_header_branch
      %15 = sbr.rel (%p13) target = $region8
    $region5: #{basic_block_3.1} parent=1 // loop_body
      %s17 = ssub.s32 %s12, 1
      %s18 = ssub.s32 %s12, 2
      %s25 = sadd.s32 1, %s20
      %p26 = scmp.ge.s32.totalorder %s25, 1
      %s27 = scalar_select %p26, 0, %s25
      %s28 = sadd.s32 1, %s19
      %s29 = scalar_select %p26, %s28, %s19
      %p30 = scmp.ge.s32.totalorder %s29, 2
      %s31 = scalar_select %p30, 0, %s29
      %s32 = ssub.s32 %s19, %s31
      %s33 = ssub.s32 %s20, %s27
      %s34 = sor.u32 %s32, %s33
      %p35 = scmp.eq.s32.totalorder %s34, 0
      %s37 = sadd.s32 %s36, 1
      %s38 = scalar_select %p35, %s36, %s37
      %p41 = pneg %p35
      %p42 = scmp.eq.s32.totalorder %s12, 1
      %p43 = por %p41, %p42
      %p44 = scmp.ne.s32.totalorder %s36, %s39
      %p45 = scmp.eq.s32.totalorder %s12, 0
      %p46 = por %p44, %p45
      %p47 = scmp.ne.s32.totalorder %s36, %s39
      %p48 = scmp.eq.s32.totalorder %s17, 1
      %p49 = por %p47, %p48
      %p50 = scmp.ne.s32.totalorder %s39, %s40
      %p51 = scmp.eq.s32.totalorder %s17, 0
      %p52 = por %p50, %p51
      %p53 = scmp.ne.s32.totalorder %s39, %s40
      %p54 = scmp.eq.s32.totalorder %s18, 1
      %p55 = por %p53, %p54
      %p57 = scmp.ne.s32.totalorder %s40, %s56
      %p58 = scmp.eq.s32.totalorder %s18, 0
      %p59 = por %p57, %p58
      %s61 = sadd.s32 %s60, 1
      %p64 = scmp.eq.s32.totalorder %s12, 1
      %p65 = scmp.ne.s32.totalorder %s60, %s62
      %p66 = scmp.eq.s32.totalorder %s12, 0
      %p67 = por %p65, %p66
      %p68 = scmp.ne.s32.totalorder %s60, %s62
      %p69 = scmp.eq.s32.totalorder %s17, 1
      %p70 = por %p68, %p69
      %p71 = scmp.ne.s32.totalorder %s62, %s63
      %p72 = scmp.eq.s32.totalorder %s17, 0
      %p73 = por %p71, %p72
      %p74 = scmp.ne.s32.totalorder %s62, %s63
      %p75 = scmp.eq.s32.totalorder %s18, 1
      %p76 = por %p74, %p75
      %p78 = scmp.ne.s32.totalorder %s63, %s77
      %p79 = scmp.eq.s32.totalorder %s18, 0
      %p80 = por %p78, %p79
      %s82 = sadd.s32 %s81, 1
      %p85 = scmp.eq.s32.totalorder %s12, 1
      %p86 = scmp.ne.s32.totalorder %s81, %s83
      %p87 = scmp.eq.s32.totalorder %s12, 0
      %p88 = por %p86, %p87
      %p89 = scmp.ne.s32.totalorder %s81, %s83
      %p90 = scmp.eq.s32.totalorder %s17, 1
      %p91 = por %p89, %p90
      %p92 = scmp.ne.s32.totalorder %s83, %s84
      %p93 = scmp.eq.s32.totalorder %s17, 0
      %p94 = por %p92, %p93
      %p95 = scmp.ne.s32.totalorder %s83, %s84
      %p96 = scmp.eq.s32.totalorder %s18, 1
      %p97 = por %p95, %p96
      %p99 = scmp.ne.s32.totalorder %s84, %s98
      %p100 = scmp.eq.s32.totalorder %s18, 0
      %p101 = por %p99, %p100
      %s102 = ssub.s32 %s19, %s31
      %s103 = ssub.s32 %s20, %s27
      %s104 = sor.u32 %s102, %s103
      %p105 = scmp.eq.s32.totalorder %s104, 0
      %s107 = sadd.s32 %s106, 1
      %s108 = scalar_select %p105, %s106, %s107
      %p111 = pneg %p105
      %p112 = scmp.eq.s32.totalorder %s12, 1
      %p113 = por %p111, %p112
      %p114 = scmp.ne.s32.totalorder %s106, %s109
      %p115 = scmp.eq.s32.totalorder %s12, 0
      %p116 = por %p114, %p115
      %p117 = scmp.ne.s32.totalorder %s106, %s109
      %p118 = scmp.eq.s32.totalorder %s17, 1
      %p119 = por %p117, %p118
      %p120 = scmp.ne.s32.totalorder %s109, %s110
      %p121 = scmp.eq.s32.totalorder %s17, 0
      %p122 = por %p120, %p121
      %p123 = scmp.ne.s32.totalorder %s109, %s110
      %p124 = scmp.eq.s32.totalorder %s18, 1
      %p125 = por %p123, %p124
      %p127 = scmp.ne.s32.totalorder %s110, %s126
      %p128 = scmp.eq.s32.totalorder %s18, 0
      %p129 = por %p127, %p128
      %p130 = scmp.le.s32.totalorder 1, %s12
      %p131 = scmp.lt.s32.totalorder %s12, 3
      %p132 = pnand %p130, %p131
      %p133 = pneg %p132
      // Predicated region
      $region9: #{basic_block_3.1} parent=5 // pred_check
        _
      $region10: #{basic_block_3.1} parent=5 // pred_check_branch
        %135 = sbr.rel (%p132) target = $region12
      $region11: #{basic_block_3.1} parent=5 // pred_region
        %s136 = ssub.s32 %s12, 1
        // Predicated region
        $region13: #{basic_block_3.1} parent=11 // pred_check
          %p137 = pneg %p73
        $region14: #{basic_block_3.1} parent=11 // pred_check_branch
          %139 = sbr.rel (%p137) target = $region16
        $region15: #{basic_block_3.1} parent=11 // pred_region
          _
        $region16: #{basic_block_3.1} parent=11 // pred_fallthru
          _
        // Predicated region
        $region17: #{basic_block_3.1} parent=11 // pred_check
          %p140 = pneg %p94
        $region18: #{basic_block_3.1} parent=11 // pred_check_branch
          %142 = sbr.rel (%p140) target = $region20
        $region19: #{basic_block_3.1} parent=11 // pred_region
          _
        $region20: #{basic_block_3.1} parent=11 // pred_fallthru
          _
      $region12: #{basic_block_3.1} parent=5 // pred_fallthru
        _
      %p143 = scmp.lt.s32.totalorder %s12, 2
      // Predicated region
      $region21: #{basic_block_3.1} parent=5 // pred_check
        %p144 = pneg %p143
      $region22: #{basic_block_3.1} parent=5 // pred_check_branch
        %146 = sbr.rel (%p144) target = $region24
      $region23: #{basic_block_3.1} parent=5 // pred_region
        // Predicated region
        $region25: #{basic_block_3.1} parent=23 // pred_check
          %p147 = pneg %p46
        $region26: #{basic_block_3.1} parent=23 // pred_check_branch
          %149 = sbr.rel (%p147) target = $region28
        $region27: #{basic_block_3.1} parent=23 // pred_region
          %p150 = scmp.lt.s32.totalorder %s19, 1
          %s151 = scalar_select %p150, %s19, 1
          %p152 = scmp.lt.s32.totalorder %s20, 0
          %s153 = scalar_select %p152, %s20, 0
          %s154 = sadd.s32 %s153, %s151
          %s155 = smul.addr %s154, 4
          %s156 = scalar_lea.vmem %s0, %s155
        $region28: #{basic_block_3.1} parent=23 // pred_fallthru
          _
      $region24: #{basic_block_3.1} parent=5 // pred_fallthru
        _
      %p157 = scmp.le.s32.totalorder 1, %s12
      %p158 = scmp.lt.s32.totalorder %s12, 3
      %p159 = pnand %p157, %p158
      %p160 = pneg %p159
      // Predicated region
      $region29: #{basic_block_3.1} parent=5 // pred_check
        _
      $region30: #{basic_block_3.1} parent=5 // pred_check_branch
        %162 = sbr.rel (%p159) target = $region32
      $region31: #{basic_block_3.1} parent=5 // pred_region
        %s163 = ssub.s32 %s12, 1
        %p164 = scmp.lt.s32.totalorder %s21, 1
        %s165 = scalar_select %p164, %s21, 1
        %p166 = scmp.lt.s32.totalorder %s22, 0
        %s167 = scalar_select %p166, %s22, 0
        %s168 = sadd.s32 %s167, %s165
        %s169 = smul.addr %s168, 4
        %s170 = scalar_lea.vmem %s0, %s169
        %p171 = pneg %p52
        %p172 = pneg %p49
        %p173 = pneg %p73
        %p174 = pneg %p70
        %p175 = pneg %p94
        %p176 = pneg %p91
        %p177 = pneg %p122
        %p178 = pneg %p119
        %s179 = sand.u32 %s109, 1
        %s180 = scalar_lea.sflag [#allocation3], %s179
        %s181 = sand.u32 %s109, 1
        %s182 = smul.addr %s181, 4
        %s183 = scalar_lea.vmem [#allocation2], %s182
        %p184 = scmp.lt.s32.totalorder %s21, 1
        %s185 = scalar_select %p184, %s21, 1
        %p186 = scmp.lt.s32.totalorder %s22, 0
        %s187 = scalar_select %p186, %s22, 0
        %s188 = sadd.s32 %s187, %s185
        %s189 = smul.addr %s188, 4
        %s190 = scalar_lea.vmem %s0, %s189
        %v191 = vld [vmem:[%s190] sm:$0xf]
        %v192 = vadd.f32 %v191, %v191
        %v193 = vld [vmem:[%s1] sm:$0xf]
        %195 = vset.pattern.permute.xlu0 0
        %196 = vperm.xlu0 %195, %v193
        %v197 = vpop.permute.xlu0 %196
        %v199 = vlaneseq
        %v200 = vshrl.u32 %v199, 7
        %v201 = vsub.s32 0, %v200
        %v202 = vrot.slane %v191, %v201
        %v203 = vmul.f32 %v197, %v202
        %204 = vset.pattern.permute.xlu0 1
        %205 = vperm.xlu0 %204, %v193
        %v206 = vpop.permute.xlu0 %205
        %v208 = vlaneseq
        %v209 = vshrl.u32 %v208, 7
        %v210 = vsub.s32 1, %v209
        %v211 = vrot.slane %v191, %v210
        %v212 = vmul.f32 %v206, %v211
        %v213 = vadd.f32 %v203, %v212
        %214 = vset.pattern.permute.xlu0 2
        %215 = vperm.xlu0 %214, %v193
        %v216 = vpop.permute.xlu0 %215
        %v218 = vlaneseq
        %v219 = vshrl.u32 %v218, 7
        %v220 = vsub.s32 2, %v219
        %v221 = vrot.slane %v191, %v220
        %v222 = vmul.f32 %v216, %v221
        %v223 = vadd.f32 %v213, %v222
        %224 = vset.pattern.permute.xlu0 3
        %225 = vperm.xlu0 %224, %v193
        %v226 = vpop.permute.xlu0 %225
        %v228 = vlaneseq
        %v229 = vshrl.u32 %v228, 7
        %v230 = vsub.s32 3, %v229
        %v231 = vrot.slane %v191, %v230
        %v232 = vmul.f32 %v226, %v231
        %v233 = vadd.f32 %v223, %v232
        %v234 = vld [vmem:[%s2] sm:$0xf]
        %236 = vset.pattern.permute.xlu0 0
        %237 = vperm.xlu0 %236, %v234
        %v238 = vpop.permute.xlu0 %237
        %v240 = vadd.f32 %v233, %v238
        %v241 = vmax.f32 %v240, 0.0
        %s242 = scalar_lea.vmem %s1, 4
        %v243 = vld [vmem:[%s242] sm:$0xf]
        %245 = vset.pattern.permute.xlu0 0
        %246 = vperm.xlu0 %245, %v243
        %v247 = vpop.permute.xlu0 %246
        %v249 = vlaneseq
        %v250 = vshrl.u32 %v249, 7
        %v251 = vsub.s32 0, %v250
        %v252 = vrot.slane %v241, %v251
        %v253 = vmul.f32 %v247, %v252
        %254 = vset.pattern.permute.xlu0 1
        %255 = vperm.xlu0 %254, %v243
        %v256 = vpop.permute.xlu0 %255
        %v258 = vlaneseq
        %v259 = vshrl.u32 %v258, 7
        %v260 = vsub.s32 1, %v259
        %v261 = vrot.slane %v241, %v260
        %v262 = vmul.f32 %v256, %v261
        %v263 = vadd.f32 %v253, %v262
        %264 = vset.pattern.permute.xlu0 2
        %265 = vperm.xlu0 %264, %v243
        %v266 = vpop.permute.xlu0 %265
        %v268 = vlaneseq
        %v269 = vshrl.u32 %v268, 7
        %v270 = vsub.s32 2, %v269
        %v271 = vrot.slane %v241, %v270
        %v272 = vmul.f32 %v266, %v271
        %v273 = vadd.f32 %v263, %v272
        %274 = vset.pattern.permute.xlu0 3
        %275 = vperm.xlu0 %274, %v243
        %v276 = vpop.permute.xlu0 %275
        %v278 = vlaneseq
        %v279 = vshrl.u32 %v278, 7
        %v280 = vsub.s32 3, %v279
        %v281 = vrot.slane %v241, %v280
        %v282 = vmul.f32 %v276, %v281
        %v283 = vadd.f32 %v273, %v282
        %s284 = scalar_lea.vmem %s2, 4
        %v285 = vld [vmem:[%s284] sm:$0xf]
        %287 = vset.pattern.permute.xlu0 0
        %288 = vperm.xlu0 %287, %v285
        %v289 = vpop.permute.xlu0 %288
        %v291 = vadd.f32 %v283, %v289
        %v292 = vmax.f32 %v291, 0.0
        %s293 = scalar_lea.vmem %s1, 8
        %v294 = vld [vmem:[%s293] sm:$0xf]
        %296 = vset.pattern.permute.xlu0 0
        %297 = vperm.xlu0 %296, %v294
        %v298 = vpop.permute.xlu0 %297
        %v300 = vlaneseq
        %v301 = vshrl.u32 %v300, 7
        %v302 = vsub.s32 0, %v301
        %v303 = vrot.slane %v292, %v302
        %v304 = vmul.f32 %v298, %v303
        %305 = vset.pattern.permute.xlu0 1
        %306 = vperm.xlu0 %305, %v294
        %v307 = vpop.permute.xlu0 %306
        %v309 = vlaneseq
        %v310 = vshrl.u32 %v309, 7
        %v311 = vsub.s32 1, %v310
        %v312 = vrot.slane %v292, %v311
        %v313 = vmul.f32 %v307, %v312
        %v314 = vadd.f32 %v304, %v313
        %315 = vset.pattern.permute.xlu0 2
        %316 = vperm.xlu0 %315, %v294
        %v317 = vpop.permute.xlu0 %316
        %v319 = vlaneseq
        %v320 = vshrl.u32 %v319, 7
        %v321 = vsub.s32 2, %v320
        %v322 = vrot.slane %v292, %v321
        %v323 = vmul.f32 %v317, %v322
        %v324 = vadd.f32 %v314, %v323
        %325 = vset.pattern.permute.xlu0 3
        %326 = vperm.xlu0 %325, %v294
        %v327 = vpop.permute.xlu0 %326
        %v329 = vlaneseq
        %v330 = vshrl.u32 %v329, 7
        %v331 = vsub.s32 3, %v330
        %v332 = vrot.slane %v292, %v331
        %v333 = vmul.f32 %v327, %v332
        %v334 = vadd.f32 %v324, %v333
        %s335 = scalar_lea.vmem %s2, 8
        %v336 = vld [vmem:[%s335] sm:$0xf]
        %338 = vset.pattern.permute.xlu0 0
        %339 = vperm.xlu0 %338, %v336
        %v340 = vpop.permute.xlu0 %339
        %v342 = vadd.f32 %v334, %v340
        %v343 = vmax.f32 %v342, 0.0
        %v344 = vadd.f32 %v343, %v192
        %s345 = scalar_lea.vmem %s1, 12
        %v346 = vld [vmem:[%s345] sm:$0xf]
        %348 = vset.pattern.permute.xlu0 0
        %349 = vperm.xlu0 %348, %v346
        %v350 = vpop.permute.xlu0 %349
        %v352 = vlaneseq
        %v353 = vshrl.u32 %v352, 7
        %v354 = vsub.s32 0, %v353
        %v355 = vrot.slane %v344, %v354
        %v356 = vmul.f32 %v350, %v355
        %357 = vset.pattern.permute.xlu0 1
        %358 = vperm.xlu0 %357, %v346
        %v359 = vpop.permute.xlu0 %358
        %v361 = vlaneseq
        %v362 = vshrl.u32 %v361, 7
        %v363 = vsub.s32 1, %v362
        %v364 = vrot.slane %v344, %v363
        %v365 = vmul.f32 %v359, %v364
        %v366 = vadd.f32 %v356, %v365
        %367 = vset.pattern.permute.xlu0 2
        %368 = vperm.xlu0 %367, %v346
        %v369 = vpop.permute.xlu0 %368
        %v371 = vlaneseq
        %v372 = vshrl.u32 %v371, 7
        %v373 = vsub.s32 2, %v372
        %v374 = vrot.slane %v344, %v373
        %v375 = vmul.f32 %v369, %v374
        %v376 = vadd.f32 %v366, %v375
        %377 = vset.pattern.permute.xlu0 3
        %378 = vperm.xlu0 %377, %v346
        %v379 = vpop.permute.xlu0 %378
        %v381 = vlaneseq
        %v382 = vshrl.u32 %v381, 7
        %v383 = vsub.s32 3, %v382
        %v384 = vrot.slane %v344, %v383
        %v385 = vmul.f32 %v379, %v384
        %v386 = vadd.f32 %v376, %v385
        %s387 = scalar_lea.vmem %s2, 12
        %v388 = vld [vmem:[%s387] sm:$0xf]
        %390 = vset.pattern.permute.xlu0 0
        %391 = vperm.xlu0 %390, %v388
        %v392 = vpop.permute.xlu0 %391
        %v394 = vadd.f32 %v386, %v392
        %v395 = vmax.f32 %v394, 0.0
        %v396 = vadd.f32 %v395, %v395
        %s397 = scalar_lea.vmem %s1, 16
        %v398 = vld [vmem:[%s397] sm:$0xf]
        %400 = vset.pattern.permute.xlu0 0
        %401 = vperm.xlu0 %400, %v398
        %v402 = vpop.permute.xlu0 %401
        %v404 = vlaneseq
        %v405 = vshrl.u32 %v404, 7
        %v406 = vsub.s32 0, %v405
        %v407 = vrot.slane %v395, %v406
        %v408 = vmul.f32 %v402, %v407
        %409 = vset.pattern.permute.xlu0 1
        %410 = vperm.xlu0 %409, %v398
        %v411 = vpop.permute.xlu0 %410
        %v413 = vlaneseq
        %v414 = vshrl.u32 %v413, 7
        %v415 = vsub.s32 1, %v414
        %v416 = vrot.slane %v395, %v415
        %v417 = vmul.f32 %v411, %v416
        %v418 = vadd.f32 %v408, %v417
        %419 = vset.pattern.permute.xlu0 2
        %420 = vperm.xlu0 %419, %v398
        %v421 = vpop.permute.xlu0 %420
        %v423 = vlaneseq
        %v424 = vshrl.u32 %v423, 7
        %v425 = vsub.s32 2, %v424
        %v426 = vrot.slane %v395, %v425
        %v427 = vmul.f32 %v421, %v426
        %v428 = vadd.f32 %v418, %v427
        %429 = vset.pattern.permute.xlu0 3
        %430 = vperm.xlu0 %429, %v398
        %v431 = vpop.permute.xlu0 %430
        %v433 = vlaneseq
        %v434 = vshrl.u32 %v433, 7
        %v435 = vsub.s32 3, %v434
        %v436 = vrot.slane %v395, %v435
        %v437 = vmul.f32 %v431, %v436
        %v438 = vadd.f32 %v428, %v437
        %s439 = scalar_lea.vmem %s2, 16
        %v440 = vld [vmem:[%s439] sm:$0xf]
        %442 = vset.pattern.permute.xlu0 0
        %443 = vperm.xlu0 %442, %v440
        %v444 = vpop.permute.xlu0 %443
        %v446 = vadd.f32 %v438, %v444
        %v447 = vmax.f32 %v446, 0.0
        %s448 = scalar_lea.vmem %s1, 20
        %v449 = vld [vmem:[%s448] sm:$0xf]
        %451 = vset.pattern.permute.xlu0 0
        %452 = vperm.xlu0 %451, %v449
        %v453 = vpop.permute.xlu0 %452
        %v455 = vlaneseq
        %v456 = vshrl.u32 %v455, 7
        %v457 = vsub.s32 0, %v456
        %v458 = vrot.slane %v447, %v457
        %v459 = vmul.f32 %v453, %v458
        %460 = vset.pattern.permute.xlu0 1
        %461 = vperm.xlu0 %460, %v449
        %v462 = vpop.permute.xlu0 %461
        %v464 = vlaneseq
        %v465 = vshrl.u32 %v464, 7
        %v466 = vsub.s32 1, %v465
        %v467 = vrot.slane %v447, %v466
        %v468 = vmul.f32 %v462, %v467
        %v469 = vadd.f32 %v459, %v468
        %470 = vset.pattern.permute.xlu0 2
        %471 = vperm.xlu0 %470, %v449
        %v472 = vpop.permute.xlu0 %471
        %v474 = vlaneseq
        %v475 = vshrl.u32 %v474, 7
        %v476 = vsub.s32 2, %v475
        %v477 = vrot.slane %v447, %v476
        %v478 = vmul.f32 %v472, %v477
        %v479 = vadd.f32 %v469, %v478
        %480 = vset.pattern.permute.xlu0 3
        %481 = vperm.xlu0 %480, %v449
        %v482 = vpop.permute.xlu0 %481
        %v484 = vlaneseq
        %v485 = vshrl.u32 %v484, 7
        %v486 = vsub.s32 3, %v485
        %v487 = vrot.slane %v447, %v486
        %v488 = vmul.f32 %v482, %v487
        %v489 = vadd.f32 %v479, %v488
        %s490 = scalar_lea.vmem %s2, 20
        %v491 = vld [vmem:[%s490] sm:$0xf]
        %493 = vset.pattern.permute.xlu0 0
        %494 = vperm.xlu0 %493, %v491
        %v495 = vpop.permute.xlu0 %494
        %v497 = vadd.f32 %v489, %v495
        %v498 = vmax.f32 %v497, 0.0
        %s499 = scalar_lea.vmem %s1, 24
        %v500 = vld [vmem:[%s499] sm:$0xf]
        %502 = vset.pattern.permute.xlu0 0
        %503 = vperm.xlu0 %502, %v500
        %v504 = vpop.permute.xlu0 %503
        %v506 = vlaneseq
        %v507 = vshrl.u32 %v506, 7
        %v508 = vsub.s32 0, %v507
        %v509 = vrot.slane %v498, %v508
        %v510 = vmul.f32 %v504, %v509
        %511 = vset.pattern.permute.xlu0 1
        %512 = vperm.xlu0 %511, %v500
        %v513 = vpop.permute.xlu0 %512
        %v515 = vlaneseq
        %v516 = vshrl.u32 %v515, 7
        %v517 = vsub.s32 1, %v516
        %v518 = vrot.slane %v498, %v517
        %v519 = vmul.f32 %v513, %v518
        %v520 = vadd.f32 %v510, %v519
        %521 = vset.pattern.permute.xlu0 2
        %522 = vperm.xlu0 %521, %v500
        %v523 = vpop.permute.xlu0 %522
        %v525 = vlaneseq
        %v526 = vshrl.u32 %v525, 7
        %v527 = vsub.s32 2, %v526
        %v528 = vrot.slane %v498, %v527
        %v529 = vmul.f32 %v523, %v528
        %v530 = vadd.f32 %v520, %v529
        %531 = vset.pattern.permute.xlu0 3
        %532 = vperm.xlu0 %531, %v500
        %v533 = vpop.permute.xlu0 %532
        %v535 = vlaneseq
        %v536 = vshrl.u32 %v535, 7
        %v537 = vsub.s32 3, %v536
        %v538 = vrot.slane %v498, %v537
        %v539 = vmul.f32 %v533, %v538
        %v540 = vadd.f32 %v530, %v539
        %s541 = scalar_lea.vmem %s2, 24
        %v542 = vld [vmem:[%s541] sm:$0xf]
        %544 = vset.pattern.permute.xlu0 0
        %545 = vperm.xlu0 %544, %v542
        %v546 = vpop.permute.xlu0 %545
        %v548 = vadd.f32 %v540, %v546
        %v549 = vmax.f32 %v548, 0.0
        %v550 = vadd.f32 %v549, %v396
        %s551 = scalar_lea.vmem %s1, 28
        %v552 = vld [vmem:[%s551] sm:$0xf]
        %554 = vset.pattern.permute.xlu0 0
        %555 = vperm.xlu0 %554, %v552
        %v556 = vpop.permute.xlu0 %555
        %v558 = vlaneseq
        %v559 = vshrl.u32 %v558, 7
        %v560 = vsub.s32 0, %v559
        %v561 = vrot.slane %v550, %v560
        %v562 = vmul.f32 %v556, %v561
        %563 = vset.pattern.permute.xlu0 1
        %564 = vperm.xlu0 %563, %v552
        %v565 = vpop.permute.xlu0 %564
        %v567 = vlaneseq
        %v568 = vshrl.u32 %v567, 7
        %v569 = vsub.s32 1, %v568
        %v570 = vrot.slane %v550, %v569
        %v571 = vmul.f32 %v565, %v570
        %v572 = vadd.f32 %v562, %v571
        %573 = vset.pattern.permute.xlu0 2
        %574 = vperm.xlu0 %573, %v552
        %v575 = vpop.permute.xlu0 %574
        %v577 = vlaneseq
        %v578 = vshrl.u32 %v577, 7
        %v579 = vsub.s32 2, %v578
        %v580 = vrot.slane %v550, %v579
        %v581 = vmul.f32 %v575, %v580
        %v582 = vadd.f32 %v572, %v581
        %583 = vset.pattern.permute.xlu0 3
        %584 = vperm.xlu0 %583, %v552
        %v585 = vpop.permute.xlu0 %584
        %v587 = vlaneseq
        %v588 = vshrl.u32 %v587, 7
        %v589 = vsub.s32 3, %v588
        %v590 = vrot.slane %v550, %v589
        %v591 = vmul.f32 %v585, %v590
        %v592 = vadd.f32 %v582, %v591
        %s593 = scalar_lea.vmem %s2, 28
        %v594 = vld [vmem:[%s593] sm:$0xf]
        %596 = vset.pattern.permute.xlu0 0
        %597 = vperm.xlu0 %596, %v594
        %v598 = vpop.permute.xlu0 %597
        %v600 = vadd.f32 %v592, %v598
        %v601 = vmax.f32 %v600, 0.0
        %v602 = vadd.f32 %v601, %v601
        %s603 = scalar_lea.vmem %s1, 32
        %v604 = vld [vmem:[%s603] sm:$0xf]
        %606 = vset.pattern.permute.xlu0 0
        %607 = vperm.xlu0 %606, %v604
        %v608 = vpop.permute.xlu0 %607
        %v610 = vlaneseq
        %v611 = vshrl.u32 %v610, 7
        %v612 = vsub.s32 0, %v611
        %v613 = vrot.slane %v601, %v612
        %v614 = vmul.f32 %v608, %v613
        %615 = vset.pattern.permute.xlu0 1
        %616 = vperm.xlu0 %615, %v604
        %v617 = vpop.permute.xlu0 %616
        %v619 = vlaneseq
        %v620 = vshrl.u32 %v619, 7
        %v621 = vsub.s32 1, %v620
        %v622 = vrot.slane %v601, %v621
        %v623 = vmul.f32 %v617, %v622
        %v624 = vadd.f32 %v614, %v623
        %625 = vset.pattern.permute.xlu0 2
        %626 = vperm.xlu0 %625, %v604
        %v627 = vpop.permute.xlu0 %626
        %v629 = vlaneseq
        %v630 = vshrl.u32 %v629, 7
        %v631 = vsub.s32 2, %v630
        %v632 = vrot.slane %v601, %v631
        %v633 = vmul.f32 %v627, %v632
        %v634 = vadd.f32 %v624, %v633
        %635 = vset.pattern.permute.xlu0 3
        %636 = vperm.xlu0 %635, %v604
        %v637 = vpop.permute.xlu0 %636
        %v639 = vlaneseq
        %v640 = vshrl.u32 %v639, 7
        %v641 = vsub.s32 3, %v640
        %v642 = vrot.slane %v601, %v641
        %v643 = vmul.f32 %v637, %v642
        %v644 = vadd.f32 %v634, %v643
        %s645 = scalar_lea.vmem %s2, 32
        %v646 = vld [vmem:[%s645] sm:$0xf]
        %648 = vset.pattern.permute.xlu0 0
        %649 = vperm.xlu0 %648, %v646
        %v650 = vpop.permute.xlu0 %649
        %v652 = vadd.f32 %v644, %v650
        %v653 = vmax.f32 %v652, 0.0
        %s654 = scalar_lea.vmem %s1, 36
        %v655 = vld [vmem:[%s654] sm:$0xf]
        %657 = vset.pattern.permute.xlu0 0
        %658 = vperm.xlu0 %657, %v655
        %v659 = vpop.permute.xlu0 %658
        %v661 = vlaneseq
        %v662 = vshrl.u32 %v661, 7
        %v663 = vsub.s32 0, %v662
        %v664 = vrot.slane %v653, %v663
        %v665 = vmul.f32 %v659, %v664
        %666 = vset.pattern.permute.xlu0 1
        %667 = vperm.xlu0 %666, %v655
        %v668 = vpop.permute.xlu0 %667
        %v670 = vlaneseq
        %v671 = vshrl.u32 %v670, 7
        %v672 = vsub.s32 1, %v671
        %v673 = vrot.slane %v653, %v672
        %v674 = vmul.f32 %v668, %v673
        %v675 = vadd.f32 %v665, %v674
        %676 = vset.pattern.permute.xlu0 2
        %677 = vperm.xlu0 %676, %v655
        %v678 = vpop.permute.xlu0 %677
        %v680 = vlaneseq
        %v681 = vshrl.u32 %v680, 7
        %v682 = vsub.s32 2, %v681
        %v683 = vrot.slane %v653, %v682
        %v684 = vmul.f32 %v678, %v683
        %v685 = vadd.f32 %v675, %v684
        %686 = vset.pattern.permute.xlu0 3
        %687 = vperm.xlu0 %686, %v655
        %v688 = vpop.permute.xlu0 %687
        %v690 = vlaneseq
        %v691 = vshrl.u32 %v690, 7
        %v692 = vsub.s32 3, %v691
        %v693 = vrot.slane %v653, %v692
        %v694 = vmul.f32 %v688, %v693
        %v695 = vadd.f32 %v685, %v694
        %s696 = scalar_lea.vmem %s2, 36
        %v697 = vld [vmem:[%s696] sm:$0xf]
        %699 = vset.pattern.permute.xlu0 0
        %700 = vperm.xlu0 %699, %v697
        %v701 = vpop.permute.xlu0 %700
        %v703 = vadd.f32 %v695, %v701
        %v704 = vmax.f32 %v703, 0.0
        %s705 = scalar_lea.vmem %s1, 40
        %v706 = vld [vmem:[%s705] sm:$0xf]
        %708 = vset.pattern.permute.xlu0 0
        %709 = vperm.xlu0 %708, %v706
        %v710 = vpop.permute.xlu0 %709
        %v712 = vlaneseq
        %v713 = vshrl.u32 %v712, 7
        %v714 = vsub.s32 0, %v713
        %v715 = vrot.slane %v704, %v714
        %v716 = vmul.f32 %v710, %v715
        %717 = vset.pattern.permute.xlu0 1
        %718 = vperm.xlu0 %717, %v706
        %v719 = vpop.permute.xlu0 %718
        %v721 = vlaneseq
        %v722 = vshrl.u32 %v721, 7
        %v723 = vsub.s32 1, %v722
        %v724 = vrot.slane %v704, %v723
        %v725 = vmul.f32 %v719, %v724
        %v726 = vadd.f32 %v716, %v725
        %727 = vset.pattern.permute.xlu0 2
        %728 = vperm.xlu0 %727, %v706
        %v729 = vpop.permute.xlu0 %728
        %v731 = vlaneseq
        %v732 = vshrl.u32 %v731, 7
        %v733 = vsub.s32 2, %v732
        %v734 = vrot.slane %v704, %v733
        %v735 = vmul.f32 %v729, %v734
        %v736 = vadd.f32 %v726, %v735
        %737 = vset.pattern.permute.xlu0 3
        %738 = vperm.xlu0 %737, %v706
        %v739 = vpop.permute.xlu0 %738
        %v741 = vlaneseq
        %v742 = vshrl.u32 %v741, 7
        %v743 = vsub.s32 3, %v742
        %v744 = vrot.slane %v704, %v743
        %v745 = vmul.f32 %v739, %v744
        %v746 = vadd.f32 %v736, %v745
        %s747 = scalar_lea.vmem %s2, 40
        %v748 = vld [vmem:[%s747] sm:$0xf]
        %750 = vset.pattern.permute.xlu0 0
        %751 = vperm.xlu0 %750, %v748
        %v752 = vpop.permute.xlu0 %751
        %v754 = vadd.f32 %v746, %v752
        %v755 = vmax.f32 %v754, 0.0
        %v756 = vadd.f32 %v755, %v602
        %s757 = scalar_lea.vmem %s1, 44
        %v758 = vld [vmem:[%s757] sm:$0xf]
        %760 = vset.pattern.permute.xlu0 0
        %761 = vperm.xlu0 %760, %v758
        %v762 = vpop.permute.xlu0 %761
        %v764 = vlaneseq
        %v765 = vshrl.u32 %v764, 7
        %v766 = vsub.s32 0, %v765
        %v767 = vrot.slane %v756, %v766
        %v768 = vmul.f32 %v762, %v767
        %769 = vset.pattern.permute.xlu0 1
        %770 = vperm.xlu0 %769, %v758
        %v771 = vpop.permute.xlu0 %770
        %v773 = vlaneseq
        %v774 = vshrl.u32 %v773, 7
        %v775 = vsub.s32 1, %v774
        %v776 = vrot.slane %v756, %v775
        %v777 = vmul.f32 %v771, %v776
        %v778 = vadd.f32 %v768, %v777
        %779 = vset.pattern.permute.xlu0 2
        %780 = vperm.xlu0 %779, %v758
        %v781 = vpop.permute.xlu0 %780
        %v783 = vlaneseq
        %v784 = vshrl.u32 %v783, 7
        %v785 = vsub.s32 2, %v784
        %v786 = vrot.slane %v756, %v785
        %v787 = vmul.f32 %v781, %v786
        %v788 = vadd.f32 %v778, %v787
        %789 = vset.pattern.permute.xlu0 3
        %790 = vperm.xlu0 %789, %v758
        %v791 = vpop.permute.xlu0 %790
        %v793 = vlaneseq
        %v794 = vshrl.u32 %v793, 7
        %v795 = vsub.s32 3, %v794
        %v796 = vrot.slane %v756, %v795
        %v797 = vmul.f32 %v791, %v796
        %v798 = vadd.f32 %v788, %v797
        %s799 = scalar_lea.vmem %s2, 44
        %v800 = vld [vmem:[%s799] sm:$0xf]
        %802 = vset.pattern.permute.xlu0 0
        %803 = vperm.xlu0 %802, %v800
        %v804 = vpop.permute.xlu0 %803
        %v806 = vadd.f32 %v798, %v804
        %v807 = vmax.f32 %v806, 0.0
        %v808 = vadd.f32 %v807, %v192
        %s809 = scalar_lea.vmem %s1, 48
        %v810 = vld [vmem:[%s809] sm:$0xf]
        %812 = vset.pattern.permute.xlu0 0
        %813 = vperm.xlu0 %812, %v810
        %v814 = vpop.permute.xlu0 %813
        %v816 = vlaneseq
        %v817 = vshrl.u32 %v816, 7
        %v818 = vsub.s32 0, %v817
        %v819 = vrot.slane %v808, %v818
        %v820 = vmul.f32 %v814, %v819
        %821 = vset.pattern.permute.xlu0 1
        %822 = vperm.xlu0 %821, %v810
        %v823 = vpop.permute.xlu0 %822
        %v825 = vlaneseq
        %v826 = vshrl.u32 %v825, 7
        %v827 = vsub.s32 1, %v826
        %v828 = vrot.slane %v808, %v827
        %v829 = vmul.f32 %v823, %v828
        %v830 = vadd.f32 %v820, %v829
        %831 = vset.pattern.permute.xlu0 2
        %832 = vperm.xlu0 %831, %v810
        %v833 = vpop.permute.xlu0 %832
        %v835 = vlaneseq
        %v836 = vshrl.u32 %v835, 7
        %v837 = vsub.s32 2, %v836
        %v838 = vrot.slane %v808, %v837
        %v839 = vmul.f32 %v833, %v838
        %v840 = vadd.f32 %v830, %v839
        %841 = vset.pattern.permute.xlu0 3
        %842 = vperm.xlu0 %841, %v810
        %v843 = vpop.permute.xlu0 %842
        %v845 = vlaneseq
        %v846 = vshrl.u32 %v845, 7
        %v847 = vsub.s32 3, %v846
        %v848 = vrot.slane %v808, %v847
        %v849 = vmul.f32 %v843, %v848
        %v850 = vadd.f32 %v840, %v849
        %s851 = scalar_lea.vmem %s2, 48
        %v852 = vld [vmem:[%s851] sm:$0xf]
        %854 = vset.pattern.permute.xlu0 0
        %855 = vperm.xlu0 %854, %v852
        %v856 = vpop.permute.xlu0 %855
        %v858 = vadd.f32 %v850, %v856
        %v859 = vmax.f32 %v858, 0.0
        %vm860 = vcmask 125952
        %861 = vst.msk [vmem:[%s183] sm:$0xf] %vm860, %v859
        %s862 = sand.u32 %s109, 1
        %s863 = scalar_lea.sflag [#allocation3], %s862
        %s864 = sand.u32 %s109, 1
        %s865 = smul.addr %s864, 4
        %s866 = scalar_lea.vmem [#allocation2], %s865
        // Predicated region
        $region33: #{basic_block_3.1} parent=31 // pred_check
          %p867 = pneg %p119
        $region34: #{basic_block_3.1} parent=31 // pred_check_branch
          %869 = sbr.rel (%p867) target = $region36
        $region35: #{basic_block_3.1} parent=31 // pred_region
          %s871 = ssub.s32 64, 64
          %872 = vsyncadd %s863, %s871
          %s873 = sadd.s32 %s22, %s21
          %s874 = smul.addr %s873, 64
          %s875 = scalar_lea.hbm %s3, %s874
          %s877 = sshll.u32 %s866, 4
          %s878 = int_to_ptr.vmem [resolvable:$true] %s877
          %880 = dma.vmem_to_hbm [thread:$0]  %s878, 64, %s875, %s863
        $region36: #{basic_block_3.1} parent=31 // pred_fallthru
          _
      $region32: #{basic_block_3.1} parent=5 // pred_fallthru
        _
      %p881 = scmp.le.s32.totalorder 2, %s12
      // Predicated region
      $region37: #{basic_block_3.1} parent=5 // pred_check
        %p882 = pneg %p881
      $region38: #{basic_block_3.1} parent=5 // pred_check_branch
        %884 = sbr.rel (%p882) target = $region40
      $region39: #{basic_block_3.1} parent=5 // pred_region
        %s885 = ssub.s32 %s12, 2
        // Predicated region
        $region41: #{basic_block_3.1} parent=39 // pred_check
          %p886 = pneg %p125
        $region42: #{basic_block_3.1} parent=39 // pred_check_branch
          %888 = sbr.rel (%p886) target = $region44
        $region43: #{basic_block_3.1} parent=39 // pred_region
          %s889 = sand.u32 %s110, 1
          %s890 = scalar_lea.sflag [#allocation3], %s889
          %s891 = sand.u32 %s110, 1
          %s892 = smul.addr %s891, 4
          %s893 = scalar_lea.vmem [#allocation2], %s892
          %894 = dma.done %s890, 64
        $region44: #{basic_block_3.1} parent=39 // pred_fallthru
          _
      $region40: #{basic_block_3.1} parent=5 // pred_fallthru
        _
    $region6: #{basic_block_3.1} parent=1 // loop_footer
      %s16 = sadd.s32 1, %s12
    $region7: #{basic_block_3.1} parent=1 // loop_footer_branch
      %11 = sbr.rel target = $region3
    $region8: #{basic_block_3.1} parent=1 // loop_exit
      _
    %895 = vsyncpa [#allocation3], 1
    %s896 = scalar_lea.sflag [#allocation3], 1
    %897 = vsyncpa %s896, 1

</llo_original>
